<compile_context>
chip_gen: v7x
topology: tpu7x:2x2x1
jax: 0.10.0
libtpu: 0.0.40
codegen_flags: <defaults>
</compile_context>

<pallas_src>
import math
import functools

import jax
import jax.numpy as jnp
from jax.experimental import pallas as pl
from jax.experimental.pallas import tpu as pltpu


def _cdiv(a, b):
    return -(-a // b)


def _round_up(v, m):
    return _cdiv(v, m) * m


def _gcn_kernel(*refs, theta, alpha, variant, residual, x_resident, tk, k_rem):
    # Unpack refs according to the static (variant, residual) configuration.
    it = iter(refs)
    adj_ref = next(it)                          # (tm, tk)  adjacency tile (may be a partial edge block)
    x_ref = next(it)                            # resident: (Nk, d_in) ; streamed: (tk, d_in)
    h0_ref = next(it)                           # (tm, d_in) initial-residual row tile
    w1_ref = next(it)                           # (d_in, d_out) weight (first half if variant)
    w2_ref = next(it) if variant else None      # (d_in, d_out) weight second half
    xres_ref = next(it) if residual else None   # (tm, d_in) x row tile (residual add)
    out_ref = next(it)                          # (tm, d_out)
    acc_ref = next(it)                          # (tm, d_in) f32 accumulator for hi

    k = pl.program_id(1)
    nk = pl.num_programs(1)

    @pl.when(k == 0)
    def _():
        acc_ref[...] = jnp.zeros_like(acc_ref)

    # x K-block for this step.  The resident copy was zero-padded to Nk rows
    # on the host, so the slice is always in bounds and tail rows are zero.
    if x_resident:
        start = pl.multiple_of(k * tk, tk)
        xk = x_ref[pl.ds(start, tk), :]
    else:
        xk = x_ref[...]

    def _accum(a_tile):
        # hi (partial) += adj_tile @ x_block   (MXU, f32 accumulation)
        acc_ref[...] += jnp.dot(a_tile, xk, preferred_element_type=jnp.float32)

    if k_rem == 0:
        _accum(adj_ref[...])
    else:
        # N is not a multiple of tk: the last K tile is a partial block whose
        # out-of-bounds columns contain stale VMEM data and MUST be masked.
        # Masking only on the tail step keeps the VPU cost to a single tile.
        @pl.when(k < nk - 1)
        def _():
            _accum(adj_ref[...])

        @pl.when(k == nk - 1)
        def _():
            col = jax.lax.broadcasted_iota(jnp.int32, adj_ref.shape, 1)
            _accum(jnp.where(col < k_rem, adj_ref[...], 0.0))

    @pl.when(k == nk - 1)
    def _():
        hi = acc_ref[...]
        h0 = h0_ref[...].astype(jnp.float32)
        r = (1.0 - alpha) * hi + alpha * h0

        if variant:
            # support = concat([hi, h0], 1)  =>  support @ W = hi @ W1 + h0 @ W2
            mm = (jnp.dot(hi.astype(w1_ref.dtype), w1_ref[...],
                          preferred_element_type=jnp.float32)
                  + jnp.dot(h0.astype(w2_ref.dtype), w2_ref[...],
                            preferred_element_type=jnp.float32))
        else:
            # support == r in the non-variant path
            mm = jnp.dot(r.astype(w1_ref.dtype), w1_ref[...],
                         preferred_element_type=jnp.float32)

        out = theta * mm + (1.0 - theta) * r
        if residual:
            out = out + xres_ref[...].astype(jnp.float32)
        out_ref[...] = out.astype(out_ref.dtype)


def graph_convolution(x, adj, h0, weight, lamda, alpha, l, *,
                      variant=False, residual=False, tm=512, tk=1024,
                      x_resident_budget_bytes=12 * 1024 * 1024):
    """GCNII GraphConvolution forward.

    Pass `adj` already cast to bfloat16 (once per model) to halve the dominant
    N^2 HBM stream; accumulation stays in f32 either way.
    """
    N, d_in = x.shape
    w_in, d_out = weight.shape
    assert adj.shape == (N, N)
    assert h0.shape == (N, d_in)
    assert w_in == (2 * d_in if variant else d_in)
    theta = math.log(lamda / l + 1.0)

    # ---- tile-size selection -------------------------------------------
    # Clamp to (aligned) problem size; keep (sublane=8, lane=128) alignment.
    tm = _round_up(max(8, min(tm, _round_up(N, 8))), 8)
    tk = _round_up(max(128, min(tk, _round_up(N, 128))), 128)
    # Prefer >=2 row tiles so the "parallel" row axis can be sharded across
    # the two TensorCores of a v7x chip (no-op for small N).
    if N >= 512:
        tm = min(tm, max(256, _round_up(_cdiv(N, 2), 256)))

    nm = _cdiv(N, tm)
    nk = _cdiv(N, tk)
    Nk = nk * tk
    k_rem = N % tk          # nonzero -> last K tile partially out of bounds

    # ---- operands ---------------------------------------------------------
    # adj is streamed unpadded in whatever dtype the caller provides; the x
    # K-operand is cast to the same dtype (small) and zero-padded on the K
    # axis so the in-kernel dynamic slice is always in bounds.
    stream_dtype = adj.dtype
    x_k = x.astype(stream_dtype)
    if Nk != N:
        x_k = jnp.pad(x_k, ((0, Nk - N), (0, 0)))

    x_itemsize = jnp.dtype(stream_dtype).itemsize
    x_resident = (Nk * d_in * x_itemsize) <= x_resident_budget_bytes

    if variant:
        w1, w2 = weight[:d_in], weight[d_in:]
    else:
        w1, w2 = weight, None

    kernel = functools.partial(
        _gcn_kernel, theta=float(theta), alpha=float(alpha),
        variant=variant, residual=residual,
        x_resident=x_resident, tk=tk, k_rem=k_rem)

    in_specs = [pl.BlockSpec((tm, tk), lambda i, k: (i, k))]        # adj tile
    if x_resident:
        in_specs.append(pl.BlockSpec((Nk, d_in), lambda i, k: (0, 0)))   # x resident (1 DMA total)
    else:
        in_specs.append(pl.BlockSpec((tk, d_in), lambda i, k: (k, 0)))   # x K-block streamed
    in_specs.append(pl.BlockSpec((tm, d_in), lambda i, k: (i, 0)))       # h0 row tile
    in_specs.append(pl.BlockSpec((d_in, d_out), lambda i, k: (0, 0)))    # weight (first half)
    operands = [adj, x_k, h0, w1]
    if variant:
        in_specs.append(pl.BlockSpec((d_in, d_out), lambda i, k: (0, 0)))  # weight 2nd half
        operands.append(w2)
    if residual:
        in_specs.append(pl.BlockSpec((tm, d_in), lambda i, k: (i, 0)))     # x row tile
        operands.append(x)

    # ---- VMEM budget (computed, never the whole physical VMEM of v7x) ------
    isz = lambda a: jnp.dtype(a.dtype).itemsize
    x_buf_rows = Nk if x_resident else tk
    vmem_bytes = (
        2 * tm * tk * isz(adj)                                   # adj double buffer
        + 2 * x_buf_rows * d_in * x_itemsize                     # x K-operand
        + 2 * tm * d_in * isz(h0)                                # h0 row tiles
        + (2 if variant else 1) * 2 * d_in * d_out * isz(weight) # weights
        + (2 * tm * d_in * isz(x) if residual else 0)            # residual x tiles
        + 2 * tm * d_out * isz(x)                                # output tiles
        + tm * d_in * 4                                          # f32 accumulator scratch
    )
    vmem_limit = max(16 * 1024 * 1024,
                     min(int(1.5 * vmem_bytes) + (2 << 20), 48 * 1024 * 1024))

    cost = pl.CostEstimate(
        flops=2 * N * N * d_in + 2 * N * w_in * d_out,
        transcendentals=0,
        bytes_accessed=(N * N * isz(adj)
                        + Nk * d_in * x_itemsize * (1 if x_resident else nm)
                        + N * d_in * isz(h0)
                        + w_in * d_out * isz(weight)
                        + (N * d_in * isz(x) if residual else 0)
                        + N * d_out * isz(x)),
    )

    out = pl.pallas_call(
        kernel,
        out_shape=jax.ShapeDtypeStruct((N, d_out), x.dtype),
        grid_spec=pltpu.PrefetchScalarGridSpec(
            num_scalar_prefetch=0,
            grid=(nm, nk),
            in_specs=in_specs,
            out_specs=pl.BlockSpec((tm, d_out), lambda i, k: (i, 0)),
            scratch_shapes=[pltpu.VMEM((tm, d_in), jnp.float32)],
        ),
        compiler_params=pltpu.CompilerParams(
            dimension_semantics=("parallel", "arbitrary"),
            vmem_limit_bytes=vmem_limit,
        ),
        cost_estimate=cost,
    )(*operands)

    return out


def _reference(x, adj, h0, weight, lamda, alpha, l, *, variant, residual):
    theta = math.log(lamda / l + 1.0)
    hp = jax.lax.Precision.HIGHEST
    hi = jnp.dot(adj, x, precision=hp)
    if variant:
        support = jnp.concatenate([hi, h0], axis=1)
        r = (1.0 - alpha) * hi + alpha * h0
    else:
        support = (1.0 - alpha) * hi + alpha * h0
        r = support
    out = theta * jnp.dot(support, weight, precision=hp) + (1.0 - theta) * r
    if residual:
        out = out + x
    return out


if __name__ == "__main__":
    D = 64                       # hidden features (in_features == out_features)
    lamda, alpha, layer = 0.5, 0.1, 2.0

    key = jax.random.PRNGKey(0)
    kx, ka, kh, kw = jax.random.split(key, 4)
    stdv = 1.0 / math.sqrt(D)

    ok = True
    # (N, variant, residual, tm, tk, adj streaming dtype, tolerance)
    #  - config 1: f32 adjacency, N not tile-aligned (exercises in-kernel
    #    K-tail masking + partial row/output blocks), multi-step K, residual.
    #  - config 2: bf16 adjacency streaming (f32 accumulation), variant path,
    #    default large tiles (clamped), megacore row split (nm=2).
    configs = [
        (300, False, True, 128, 128, jnp.float32, 2e-3),
        (512, True, False, 512, 1024, jnp.bfloat16, 3e-2),
    ]
    for N, variant, residual, tm, tk, adj_dtype, tol in configs:
        x = jax.random.normal(kx, (N, D), dtype=jnp.float32)
        adj = jax.random.uniform(ka, (N, N), dtype=jnp.float32)
        adj = adj / jnp.sum(adj, axis=1, keepdims=True)   # row-normalized dense "sparse" adj
        h0 = jax.random.normal(kh, (N, D), dtype=jnp.float32)
        w_in = 2 * D if variant else D
        w = jax.random.uniform(kw, (w_in, D), minval=-stdv, maxval=stdv,
                               dtype=jnp.float32)

        # For a multi-layer GCNII stack the adjacency is cast to the streaming
        # dtype once and reused by every layer (not a per-call cost).
        adj_stream = adj.astype(adj_dtype)

        out = graph_convolution(x, adj_stream, h0, w, lamda, alpha, layer,
                                variant=variant, residual=residual, tm=tm, tk=tk)
        out = jax.block_until_ready(out)
        ref = _reference(x, adj, h0, w, lamda, alpha, layer,
                         variant=variant, residual=residual)
        ok = ok and bool(jnp.allclose(out, ref, atol=tol, rtol=tol))

    if ok:
        print("KERNEL_OK")
    else:
        print("KERNEL_MISMATCH")
</pallas_src>

<mosaic_0001>
module attributes {stable_mosaic.version = 11 : i64} {
  func.func @_gcn_kernel(%arg0: i32, %arg1: i32, %arg2: memref<128x128xf32, #tpu.memory_space<vmem>>, %arg3: memref<384x64xf32, #tpu.memory_space<vmem>>, %arg4: memref<128x64xf32, #tpu.memory_space<vmem>>, %arg5: memref<64x64xf32, #tpu.memory_space<vmem>>, %arg6: memref<128x64xf32, #tpu.memory_space<vmem>>, %arg7: memref<128x64xf32, #tpu.memory_space<vmem>>, %arg8: memref<128x64xf32, #tpu.memory_space<vmem>>) attributes {dimension_semantics = [#tpu.dimension_semantics<parallel>, #tpu.dimension_semantics<arbitrary>], iteration_bounds = array<i64: 3, 3>, scalar_prefetch = 0 : i64, scratch_operands = 1 : i64, tpu.core_type = #tpu.core_type<tc>, window_params = [{transform_indices = @transform_0, window_bounds = array<i64: 128, 128>}, {pipeline_mode = #tpu.pipeline_mode<synchronous>, transform_indices = @transform_1, window_bounds = array<i64: 384, 64>}, {transform_indices = @transform_2, window_bounds = array<i64: 128, 64>}, {pipeline_mode = #tpu.pipeline_mode<synchronous>, transform_indices = @transform_3, window_bounds = array<i64: 64, 64>}, {transform_indices = @transform_4, window_bounds = array<i64: 128, 64>}, {transform_indices = @transform_5, window_bounds = array<i64: 128, 64>}]} {
    %c0_i32 = arith.constant 0 : i32
    %0 = arith.cmpi eq, %arg1, %c0_i32 : i32
    %1 = arith.extui %0 : i1 to i32
    %c0_i32_0 = arith.constant 0 : i32
    %2 = arith.cmpi ne, %1, %c0_i32_0 : i32
    scf.if %2 {
      %cst = arith.constant 0.000000e+00 : f32
      %16 = vector.broadcast %cst : f32 to vector<128x64xf32>
      %c0_6 = arith.constant 0 : index
      %c0_7 = arith.constant 0 : index
      %17 = vector.load %arg8[%c0_6, %c0_7] : memref<128x64xf32, #tpu.memory_space<vmem>>, vector<128x64xf32>
      tpu.vector_store %arg8[%c0_6, %c0_7], %16 {strides = array<i32>} : memref<128x64xf32, #tpu.memory_space<vmem>>, vector<128x64xf32>,
    } else {
    }
    %c128_i32 = arith.constant 128 : i32
    %3 = arith.muli %arg1, %c128_i32 : i32
    %4 = tpu.assume_multiple %3, 128 : i32
    %5 = arith.index_cast %4 : i32 to index
    %c0 = arith.constant 0 : index
    %6 = vector.load %arg3[%5, %c0] : memref<384x64xf32, #tpu.memory_space<vmem>>, vector<128x64xf32>
    %c2_i32 = arith.constant 2 : i32
    %7 = arith.cmpi slt, %arg1, %c2_i32 : i32
    %8 = arith.extui %7 : i1 to i32
    %c0_i32_1 = arith.constant 0 : i32
    %9 = arith.cmpi ne, %8, %c0_i32_1 : i32
    scf.if %9 {
      %c0_6 = arith.constant 0 : index
      %c0_7 = arith.constant 0 : index
      %16 = vector.load %arg2[%c0_6, %c0_7] : memref<128x128xf32, #tpu.memory_space<vmem>>, vector<128x128xf32>
      %c0_8 = arith.constant 0 : index
      %c0_9 = arith.constant 0 : index
      %17 = vector.load %arg8[%c0_8, %c0_9] : memref<128x64xf32, #tpu.memory_space<vmem>>, vector<128x64xf32>
      %cst = arith.constant dense<0.000000e+00> : vector<128x64xf32>
      %18 = tpu.matmul %16, %6, %cst {dimension_numbers = #tpu.dot_dimension_numbers<[1], [0], [0], [1], [0, 0, 1, 1], [], []>} : vector<128x128xf32>, vector<128x64xf32>, vector<128x64xf32> -> vector<128x64xf32>
      %19 = arith.addf %17, %18 : vector<128x64xf32>
      %c0_10 = arith.constant 0 : index
      %c0_11 = arith.constant 0 : index
      %20 = vector.load %arg8[%c0_10, %c0_11] : memref<128x64xf32, #tpu.memory_space<vmem>>, vector<128x64xf32>
      tpu.vector_store %arg8[%c0_10, %c0_11], %19 {strides = array<i32>} : memref<128x64xf32, #tpu.memory_space<vmem>>, vector<128x64xf32>,
    } else {
    }
    %c2_i32_2 = arith.constant 2 : i32
    %10 = arith.cmpi eq, %arg1, %c2_i32_2 : i32
    %11 = arith.extui %10 : i1 to i32
    %c0_i32_3 = arith.constant 0 : i32
    %12 = arith.cmpi ne, %11, %c0_i32_3 : i32
    scf.if %12 {
      %16 = tpu.iota {dimensions = array<i32: 1>} : vector<128x128xi32>
      %c44_i32 = arith.constant 44 : i32
      %17 = vector.broadcast %c44_i32 : i32 to vector<128x128xi32>
      %18 = arith.cmpi slt, %16, %17 : vector<128x128xi32>
      %c0_6 = arith.constant 0 : index
      %c0_7 = arith.constant 0 : index
      %19 = vector.load %arg2[%c0_6, %c0_7] : memref<128x128xf32, #tpu.memory_space<vmem>>, vector<128x128xf32>
      %cst = arith.constant 0.000000e+00 : f32
      %20 = vector.broadcast %cst : f32 to vector<128x128xf32>
      %21 = arith.select %18, %19, %20 : vector<128x128xi1>, vector<128x128xf32>
      %c0_8 = arith.constant 0 : index
      %c0_9 = arith.constant 0 : index
      %22 = vector.load %arg8[%c0_8, %c0_9] : memref<128x64xf32, #tpu.memory_space<vmem>>, vector<128x64xf32>
      %cst_10 = arith.constant dense<0.000000e+00> : vector<128x64xf32>
      %23 = tpu.matmul %21, %6, %cst_10 {dimension_numbers = #tpu.dot_dimension_numbers<[1], [0], [0], [1], [0, 0, 1, 1], [], []>} : vector<128x128xf32>, vector<128x64xf32>, vector<128x64xf32> -> vector<128x64xf32>
      %24 = arith.addf %22, %23 : vector<128x64xf32>
      %c0_11 = arith.constant 0 : index
      %c0_12 = arith.constant 0 : index
      %25 = vector.load %arg8[%c0_11, %c0_12] : memref<128x64xf32, #tpu.memory_space<vmem>>, vector<128x64xf32>
      tpu.vector_store %arg8[%c0_11, %c0_12], %24 {strides = array<i32>} : memref<128x64xf32, #tpu.memory_space<vmem>>, vector<128x64xf32>,
    } else {
    }
    %c2_i32_4 = arith.constant 2 : i32
    %13 = arith.cmpi eq, %arg1, %c2_i32_4 : i32
    %14 = arith.extui %13 : i1 to i32
    %c0_i32_5 = arith.constant 0 : i32
    %15 = arith.cmpi ne, %14, %c0_i32_5 : i32
    scf.if %15 {
      %c0_6 = arith.constant 0 : index
      %c0_7 = arith.constant 0 : index
      %16 = vector.load %arg8[%c0_6, %c0_7] : memref<128x64xf32, #tpu.memory_space<vmem>>, vector<128x64xf32>
      %c0_8 = arith.constant 0 : index
      %c0_9 = arith.constant 0 : index
      %17 = vector.load %arg4[%c0_8, %c0_9] : memref<128x64xf32, #tpu.memory_space<vmem>>, vector<128x64xf32>
      %cst = arith.constant 0.899999976 : f32
      %18 = vector.broadcast %cst : f32 to vector<128x64xf32>
      %19 = arith.mulf %18, %16 : vector<128x64xf32>
      %cst_10 = arith.constant 1.000000e-01 : f32
      %20 = vector.broadcast %cst_10 : f32 to vector<128x64xf32>
      %21 = arith.mulf %20, %17 : vector<128x64xf32>
      %22 = arith.addf %19, %21 : vector<128x64xf32>
      %c0_11 = arith.constant 0 : index
      %c0_12 = arith.constant 0 : index
      %23 = vector.load %arg5[%c0_11, %c0_12] : memref<64x64xf32, #tpu.memory_space<vmem>>, vector<64x64xf32>
      %cst_13 = arith.constant dense<0.000000e+00> : vector<128x64xf32>
      %24 = tpu.matmul %22, %23, %cst_13 {dimension_numbers = #tpu.dot_dimension_numbers<[1], [0], [0], [1], [0, 0, 1, 1], [], []>} : vector<128x64xf32>, vector<64x64xf32>, vector<128x64xf32> -> vector<128x64xf32>
      %cst_14 = arith.constant 0.223143548 : f32
      %25 = vector.broadcast %cst_14 : f32 to vector<128x64xf32>
      %26 = arith.mulf %25, %24 : vector<128x64xf32>
      %cst_15 = arith.constant 0.776856422 : f32
      %27 = vector.broadcast %cst_15 : f32 to vector<128x64xf32>
      %28 = arith.mulf %27, %22 : vector<128x64xf32>
      %29 = arith.addf %26, %28 : vector<128x64xf32>
      %c0_16 = arith.constant 0 : index
      %c0_17 = arith.constant 0 : index
      %30 = vector.load %arg6[%c0_16, %c0_17] : memref<128x64xf32, #tpu.memory_space<vmem>>, vector<128x64xf32>
      %31 = arith.addf %29, %30 : vector<128x64xf32>
      %c0_18 = arith.constant 0 : index
      %c0_19 = arith.constant 0 : index
      %32 = vector.load %arg7[%c0_18, %c0_19] : memref<128x64xf32, #tpu.memory_space<vmem>>, vector<128x64xf32>
      tpu.vector_store %arg7[%c0_18, %c0_19], %31 {strides = array<i32>} : memref<128x64xf32, #tpu.memory_space<vmem>>, vector<128x64xf32>,
    } else {
    }
    return
  }
  func.func @transform_0(%arg0: i32, %arg1: i32) -> (i32, i32) {
    %c0_i32 = arith.constant 0 : i32
    return %arg0, %arg1 : i32, i32
  }
  func.func @transform_1(%arg0: i32, %arg1: i32) -> (i32, i32) {
    %c0_i32 = arith.constant 0 : i32
    %c0_i32_0 = arith.constant 0 : i32
    %c0_i32_1 = arith.constant 0 : i32
    return %c0_i32, %c0_i32_0 : i32, i32
  }
  func.func @transform_2(%arg0: i32, %arg1: i32) -> (i32, i32) {
    %c0_i32 = arith.constant 0 : i32
    %c0_i32_0 = arith.constant 0 : i32
    return %arg0, %c0_i32 : i32, i32
  }
  func.func @transform_3(%arg0: i32, %arg1: i32) -> (i32, i32) {
    %c0_i32 = arith.constant 0 : i32
    %c0_i32_0 = arith.constant 0 : i32
    %c0_i32_1 = arith.constant 0 : i32
    return %c0_i32, %c0_i32_0 : i32, i32
  }
  func.func @transform_4(%arg0: i32, %arg1: i32) -> (i32, i32) {
    %c0_i32 = arith.constant 0 : i32
    %c0_i32_0 = arith.constant 0 : i32
    return %arg0, %c0_i32 : i32, i32
  }
  func.func @transform_5(%arg0: i32, %arg1: i32) -> (i32, i32) {
    %c0_i32 = arith.constant 0 : i32
    %c0_i32_0 = arith.constant 0 : i32
    return %arg0, %c0_i32 : i32, i32
  }
}

</mosaic_0001>

<llo_original>
// kernel: tpu_custom_call.1
$region0: #{tpu_custom_call.1}
  #allocation0 [shape = 'u32[]', space=smem, size = 0x4, offset = 0x4, fixed_abs, tag = 'smem constant byte address 0x4 - core index']
  #allocation1 [shape = 'u32[144,128]{1,0:T(1,128)}', space=vmem, size = 0x12000, scoped, tag = 'internal scratch']
  #allocation2 [shape = 'f32[128,64]{1,0:T(8,128)}', space=vmem, size = 0x10000, scoped, tag = 'scratch operand']
  %s0 = inlined_call_operand.vmem [shape: f32[300,300], index: 0, kind: input, shape index: {}]
  %s1 = inlined_call_operand.vmem [shape: f32[384,64], index: 1, kind: input, shape index: {}]
  %s2 = inlined_call_operand.vmem [shape: f32[300,64], index: 2, kind: input, shape index: {}]
  %s3 = inlined_call_operand.vmem [shape: f32[64,64], index: 3, kind: input, shape index: {}]
  %s4 = inlined_call_operand.vmem [shape: f32[300,64], index: 4, kind: input, shape index: {}]
  %s5 = inlined_call_operand.vmem [shape: f32[300,64], index: 5, kind: output, shape index: {}]
  %s6 = sld [smem:[#allocation0]]
  $region165: #{tpu_custom_call.1} parent=0
    _
  %s8 = ssub.s32 1, %s6
  %s9 = scalar_select 0, %s8, %s6
  $region1: #{tpu_custom_call.1} parent=0
    #allocation3 [shape = 'u8[131072]{0}', space=vmem, size = 0x20000, scoped, tag = 'input window, operand 0']
    #allocation4 [shape = 'u8[131072]{0}', space=vmem, size = 0x20000, scoped, tag = 'output window, operand 0']
    loop: start=0, step=1, limit=11
    $region2: #{tpu_custom_call.1} parent=1 // loop_pre_header
      _
    $region3: #{tpu_custom_call.1} parent=1 // loop_header
      %s11 = sphi 0, %s15
      %p12 = scmp.ge.s32.totalorder %s11, 11
      %s18 = sphi 0, %s30
      %s19 = sphi 0, %s26
      %s20 = sphi 0, %s18
      %s21 = sphi 0, %s19
      %s22 = sphi 0, %s20
      %s23 = sphi 0, %s21
      %s35 = sphi 0, %s37
      %s38 = sphi 0, %s35
      %s39 = sphi 0, %s38
      %s55 = sphi 0, %s39
      %s59 = sphi 0, %s59
      %s61 = sphi 0, %s59
      %s62 = sphi 0, %s61
      %s76 = sphi 0, %s62
      %s82 = sphi 0, %s84
      %s85 = sphi 0, %s82
      %s86 = sphi 0, %s85
      %s102 = sphi 0, %s86
      %s106 = sphi 0, %s106
      %s108 = sphi 0, %s106
      %s109 = sphi 0, %s108
      %s123 = sphi 0, %s109
      %s129 = sphi 0, %s131
      %s132 = sphi 0, %s129
      %s133 = sphi 0, %s132
      %s149 = sphi 0, %s133
      %s155 = sphi 0, %s157
      %s158 = sphi 0, %s155
      %s159 = sphi 0, %s158
      %s175 = sphi 0, %s159
    $region4: #{tpu_custom_call.1} parent=1 // loop_header_branch
      %14 = sbr.rel (%p12) target = $region8
    $region5: #{tpu_custom_call.1} parent=1 // loop_body
      %s16 = ssub.s32 %s11, 1
      %s17 = ssub.s32 %s11, 2
      %s24 = sadd.s32 1, %s19
      %p25 = scmp.ge.s32.totalorder %s24, 3
      %s26 = scalar_select %p25, 0, %s24
      %s27 = sadd.s32 1, %s18
      %s28 = scalar_select %p25, %s27, %s18
      %p29 = scmp.ge.s32.totalorder %s28, 3
      %s30 = scalar_select %p29, 0, %s28
      %s31 = ssub.s32 %s18, %s30
      %s32 = ssub.s32 %s19, %s26
      %s33 = sor.u32 %s31, %s32
      %p34 = scmp.eq.s32.totalorder %s33, 0
      %s36 = sadd.s32 %s35, 1
      %s37 = scalar_select %p34, %s35, %s36
      %p40 = pneg %p34
      %p41 = scmp.eq.s32.totalorder %s11, 8
      %p42 = por %p40, %p41
      %p43 = scmp.ne.s32.totalorder %s35, %s38
      %p44 = scmp.eq.s32.totalorder %s11, 0
      %p45 = por %p43, %p44
      %p46 = scmp.ne.s32.totalorder %s35, %s38
      %p47 = scmp.eq.s32.totalorder %s16, 8
      %p48 = por %p46, %p47
      %p49 = scmp.ne.s32.totalorder %s38, %s39
      %p50 = scmp.eq.s32.totalorder %s16, 0
      %p51 = por %p49, %p50
      %p52 = scmp.ne.s32.totalorder %s38, %s39
      %p53 = scmp.eq.s32.totalorder %s17, 8
      %p54 = por %p52, %p53
      %p56 = scmp.ne.s32.totalorder %s39, %s55
      %p57 = scmp.eq.s32.totalorder %s17, 0
      %p58 = por %p56, %p57
      %s60 = sadd.s32 %s59, 1
      %p63 = scmp.eq.s32.totalorder %s11, 8
      %p64 = scmp.ne.s32.totalorder %s59, %s61
      %p65 = scmp.eq.s32.totalorder %s11, 0
      %p66 = por %p64, %p65
      %p67 = scmp.ne.s32.totalorder %s59, %s61
      %p68 = scmp.eq.s32.totalorder %s16, 8
      %p69 = por %p67, %p68
      %p70 = scmp.ne.s32.totalorder %s61, %s62
      %p71 = scmp.eq.s32.totalorder %s16, 0
      %p72 = por %p70, %p71
      %p73 = scmp.ne.s32.totalorder %s61, %s62
      %p74 = scmp.eq.s32.totalorder %s17, 8
      %p75 = por %p73, %p74
      %p77 = scmp.ne.s32.totalorder %s62, %s76
      %p78 = scmp.eq.s32.totalorder %s17, 0
      %p79 = por %p77, %p78
      %s80 = ssub.s32 %s18, %s30
      %p81 = scmp.eq.s32.totalorder %s80, 0
      %s83 = sadd.s32 %s82, 1
      %s84 = scalar_select %p81, %s82, %s83
      %p87 = pneg %p81
      %p88 = scmp.eq.s32.totalorder %s11, 8
      %p89 = por %p87, %p88
      %p90 = scmp.ne.s32.totalorder %s82, %s85
      %p91 = scmp.eq.s32.totalorder %s11, 0
      %p92 = por %p90, %p91
      %p93 = scmp.ne.s32.totalorder %s82, %s85
      %p94 = scmp.eq.s32.totalorder %s16, 8
      %p95 = por %p93, %p94
      %p96 = scmp.ne.s32.totalorder %s85, %s86
      %p97 = scmp.eq.s32.totalorder %s16, 0
      %p98 = por %p96, %p97
      %p99 = scmp.ne.s32.totalorder %s85, %s86
      %p100 = scmp.eq.s32.totalorder %s17, 8
      %p101 = por %p99, %p100
      %p103 = scmp.ne.s32.totalorder %s86, %s102
      %p104 = scmp.eq.s32.totalorder %s17, 0
      %p105 = por %p103, %p104
      %s107 = sadd.s32 %s106, 1
      %p110 = scmp.eq.s32.totalorder %s11, 8
      %p111 = scmp.ne.s32.totalorder %s106, %s108
      %p112 = scmp.eq.s32.totalorder %s11, 0
      %p113 = por %p111, %p112
      %p114 = scmp.ne.s32.totalorder %s106, %s108
      %p115 = scmp.eq.s32.totalorder %s16, 8
      %p116 = por %p114, %p115
      %p117 = scmp.ne.s32.totalorder %s108, %s109
      %p118 = scmp.eq.s32.totalorder %s16, 0
      %p119 = por %p117, %p118
      %p120 = scmp.ne.s32.totalorder %s108, %s109
      %p121 = scmp.eq.s32.totalorder %s17, 8
      %p122 = por %p120, %p121
      %p124 = scmp.ne.s32.totalorder %s109, %s123
      %p125 = scmp.eq.s32.totalorder %s17, 0
      %p126 = por %p124, %p125
      %s127 = ssub.s32 %s18, %s30
      %p128 = scmp.eq.s32.totalorder %s127, 0
      %s130 = sadd.s32 %s129, 1
      %s131 = scalar_select %p128, %s129, %s130
      %p134 = pneg %p128
      %p135 = scmp.eq.s32.totalorder %s11, 8
      %p136 = por %p134, %p135
      %p137 = scmp.ne.s32.totalorder %s129, %s132
      %p138 = scmp.eq.s32.totalorder %s11, 0
      %p139 = por %p137, %p138
      %p140 = scmp.ne.s32.totalorder %s129, %s132
      %p141 = scmp.eq.s32.totalorder %s16, 8
      %p142 = por %p140, %p141
      %p143 = scmp.ne.s32.totalorder %s132, %s133
      %p144 = scmp.eq.s32.totalorder %s16, 0
      %p145 = por %p143, %p144
      %p146 = scmp.ne.s32.totalorder %s132, %s133
      %p147 = scmp.eq.s32.totalorder %s17, 8
      %p148 = por %p146, %p147
      %p150 = scmp.ne.s32.totalorder %s133, %s149
      %p151 = scmp.eq.s32.totalorder %s17, 0
      %p152 = por %p150, %p151
      %s153 = ssub.s32 %s18, %s30
      %p154 = scmp.eq.s32.totalorder %s153, 0
      %s156 = sadd.s32 %s155, 1
      %s157 = scalar_select %p154, %s155, %s156
      %p160 = pneg %p154
      %p161 = scmp.eq.s32.totalorder %s11, 8
      %p162 = por %p160, %p161
      %p163 = scmp.ne.s32.totalorder %s155, %s158
      %p164 = scmp.eq.s32.totalorder %s11, 0
      %p165 = por %p163, %p164
      %p166 = scmp.ne.s32.totalorder %s155, %s158
      %p167 = scmp.eq.s32.totalorder %s16, 8
      %p168 = por %p166, %p167
      %p169 = scmp.ne.s32.totalorder %s158, %s159
      %p170 = scmp.eq.s32.totalorder %s16, 0
      %p171 = por %p169, %p170
      %p172 = scmp.ne.s32.totalorder %s158, %s159
      %p173 = scmp.eq.s32.totalorder %s17, 8
      %p174 = por %p172, %p173
      %p176 = scmp.ne.s32.totalorder %s159, %s175
      %p177 = scmp.eq.s32.totalorder %s17, 0
      %p178 = por %p176, %p177
      %p179 = scmp.le.s32.totalorder 1, %s11
      %p180 = scmp.lt.s32.totalorder %s11, 10
      %p181 = pnand %p179, %p180
      %p182 = pneg %p181
      // Predicated region
      $region9: #{tpu_custom_call.1} parent=5 // pred_check
        _
      $region10: #{tpu_custom_call.1} parent=5 // pred_check_branch
        %184 = sbr.rel (%p181) target = $region12
      $region11: #{tpu_custom_call.1} parent=5 // pred_region
        %s185 = ssub.s32 %s11, 1
        // Predicated region
        $region13: #{tpu_custom_call.1} parent=11 // pred_check
          %p186 = pneg %p72
        $region14: #{tpu_custom_call.1} parent=11 // pred_check_branch
          %188 = sbr.rel (%p186) target = $region16
        $region15: #{tpu_custom_call.1} parent=11 // pred_region
          _
        $region16: #{tpu_custom_call.1} parent=11 // pred_fallthru
          _
        // Predicated region
        $region17: #{tpu_custom_call.1} parent=11 // pred_check
          %p189 = pneg %p119
        $region18: #{tpu_custom_call.1} parent=11 // pred_check_branch
          %191 = sbr.rel (%p189) target = $region20
        $region19: #{tpu_custom_call.1} parent=11 // pred_region
          _
        $region20: #{tpu_custom_call.1} parent=11 // pred_fallthru
          _
      $region12: #{tpu_custom_call.1} parent=5 // pred_fallthru
        _
      %p192 = scmp.lt.s32.totalorder %s11, 9
      // Predicated region
      $region21: #{tpu_custom_call.1} parent=5 // pred_check
        %p193 = pneg %p192
      $region22: #{tpu_custom_call.1} parent=5 // pred_check_branch
        %195 = sbr.rel (%p193) target = $region24
      $region23: #{tpu_custom_call.1} parent=5 // pred_region
        // Predicated region
        $region25: #{tpu_custom_call.1} parent=23 // pred_check
          %p196 = pneg %p45
        $region26: #{tpu_custom_call.1} parent=23 // pred_check_branch
          %198 = sbr.rel (%p196) target = $region28
        $region27: #{tpu_custom_call.1} parent=23 // pred_region
          %s199 = sand.u32 %s35, 1
          %s200 = sand.u32 %s35, 1
          %s201 = smul.addr %s200, 128
          %s202 = scalar_lea.vmem [#allocation3], %s201
          %s203 = smul.u32 16, %s18
          %s204 = ssub.s32 38, %s203
          %p205 = scmp.lt.s32.totalorder %s204, 16
          %s206 = scalar_select %p205, %s204, 16
          %s207 = smul.u32 128, %s206
          %p208 = scmp.ne.s32.totalorder 0, %s207
          %s209 = smul.addr %s203, 3
          %s210 = sadd.s32 %s19, %s209
          %s211 = smul.addr %s210, 8
          %s212 = scalar_lea.vmem %s0, %s211
          // Predicated region
          $region29: #{tpu_custom_call.1} parent=27 // pred_check
            %p213 = pneg %p208
          $region30: #{tpu_custom_call.1} parent=27 // pred_check_branch
            %215 = sbr.rel (%p213) target = $region32
          $region31: #{tpu_custom_call.1} parent=27 // pred_region
            // Predicated region
            $region33: #{tpu_custom_call.1} parent=31 // pred_check
              _
            $region34: #{tpu_custom_call.1} parent=31 // pred_check_branch
              %217 = sbr.rel (0) target = $region36
            $region35: #{tpu_custom_call.1} parent=31 // pred_region
              // Predicated region
              $region55: #{tpu_custom_call.1} parent=35 // pred_check
                _
              $region56: #{tpu_custom_call.1} parent=35 // pred_check_branch
                %296 = sbr.rel (0) target = $region58
              $region57: #{tpu_custom_call.1} parent=35 // pred_region
                %s297 = sshrl.u32 %s206, 4
                // While loop
                $region59: #{tpu_custom_call.1} parent=57 // loop_pre_header
                  _
                $region60: #{tpu_custom_call.1} parent=57 // loop_header
                  %s299 = sphi 0, %s301
                  %p300 = scmp.ge.s32.totalorder %s299, %s297
                  %s304 = sphi 0, %s341
                  %s305 = sphi %s212, %s344
                  %s306 = sphi %s202, %s345
                $region61: #{tpu_custom_call.1} parent=57 // loop_header_branch
                  %303 = sbr.rel (%p300) target = $region65
                $region62: #{tpu_custom_call.1} parent=57 // loop_body
                  %v307 = vld [vmem:[%s305] sm:$0xff]
                  %308 = vst [vmem:[%s306] sm:$0xff] %v307
                  %v309 = vld [vmem:[%s305 + $0x18] sm:$0xff]
                  %310 = vst [vmem:[%s306 + $0x8] sm:$0xff] %v309
                  %v311 = vld [vmem:[%s305 + $0x30] sm:$0xff]
                  %312 = vst [vmem:[%s306 + $0x10] sm:$0xff] %v311
                  %v313 = vld [vmem:[%s305 + $0x48] sm:$0xff]
                  %314 = vst [vmem:[%s306 + $0x18] sm:$0xff] %v313
                  %v315 = vld [vmem:[%s305 + $0x60] sm:$0xff]
                  %316 = vst [vmem:[%s306 + $0x20] sm:$0xff] %v315
                  %v317 = vld [vmem:[%s305 + $0x78] sm:$0xff]
                  %318 = vst [vmem:[%s306 + $0x28] sm:$0xff] %v317
                  %v319 = vld [vmem:[%s305 + $0x90] sm:$0xff]
                  %320 = vst [vmem:[%s306 + $0x30] sm:$0xff] %v319
                  %v321 = vld [vmem:[%s305 + $0xa8] sm:$0xff]
                  %322 = vst [vmem:[%s306 + $0x38] sm:$0xff] %v321
                  %v323 = vld [vmem:[%s305 + $0xc0] sm:$0xff]
                  %324 = vst [vmem:[%s306 + $0x40] sm:$0xff] %v323
                  %v325 = vld [vmem:[%s305 + $0xd8] sm:$0xff]
                  %326 = vst [vmem:[%s306 + $0x48] sm:$0xff] %v325
                  %v327 = vld [vmem:[%s305 + $0xf0] sm:$0xff]
                  %328 = vst [vmem:[%s306 + $0x50] sm:$0xff] %v327
                  %v329 = vld [vmem:[%s305 + $0x108] sm:$0xff]
                  %330 = vst [vmem:[%s306 + $0x58] sm:$0xff] %v329
                  %v331 = vld [vmem:[%s305 + $0x120] sm:$0xff]
                  %332 = vst [vmem:[%s306 + $0x60] sm:$0xff] %v331
                  %v333 = vld [vmem:[%s305 + $0x138] sm:$0xff]
                  %334 = vst [vmem:[%s306 + $0x68] sm:$0xff] %v333
                  %v335 = vld [vmem:[%s305 + $0x150] sm:$0xff]
                  %336 = vst [vmem:[%s306 + $0x70] sm:$0xff] %v335
                  %v337 = vld [vmem:[%s305 + $0x168] sm:$0xff]
                  %338 = vst [vmem:[%s306 + $0x78] sm:$0xff] %v337
                  %s339 = sadd.s32 1, %s304
                  %p340 = scmp.ge.s32.totalorder %s339, %s297
                  %s341 = scalar_select %p340, 0, %s339
                  %s342 = smul.u32 %s341, 384
                  %s343 = smul.u32 %s341, 128
                  %s344 = scalar_lea.vmem %s212, %s342
                  %s345 = scalar_lea.vmem %s202, %s343 [#allocation3]
                $region63: #{tpu_custom_call.1} parent=57 // loop_footer
                  %s301 = sadd.s32 %s299, 1
                $region64: #{tpu_custom_call.1} parent=57 // loop_footer_branch
                  %298 = sbr.rel target = $region60
                $region65: #{tpu_custom_call.1} parent=57 // loop_exit
                  _
                %s346 = sshrl.u32 %s206, 4
                %s347 = sand.u32 %s206, 15
                %s348 = smul.u32 %s346, 16
                %s349 = smul.u32 24, %s348
                %s350 = scalar_lea.vmem %s212, %s349
                %s351 = smul.u32 8, %s348
                %s352 = scalar_lea.vmem %s202, %s351 [#allocation3]
                // While loop
                $region66: #{tpu_custom_call.1} parent=57 // loop_pre_header
                  _
                $region67: #{tpu_custom_call.1} parent=57 // loop_header
                  %s354 = sphi 0, %s356
                  %p355 = scmp.ge.s32.totalorder %s354, %s347
                  %s359 = sphi 0, %s366
                  %s360 = sphi %s350, %s369
                  %s361 = sphi %s352, %s370
                $region68: #{tpu_custom_call.1} parent=57 // loop_header_branch
                  %358 = sbr.rel (%p355) target = $region72
                $region69: #{tpu_custom_call.1} parent=57 // loop_body
                  %v362 = vld [vmem:[%s360] sm:$0xff]
                  %363 = vst [vmem:[%s361] sm:$0xff] %v362
                  %s364 = sadd.s32 1, %s359
                  %p365 = scmp.ge.s32.totalorder %s364, %s347
                  %s366 = scalar_select %p365, 0, %s364
                  %s367 = smul.u32 %s366, 24
                  %s368 = smul.u32 %s366, 8
                  %s369 = scalar_lea.vmem %s350, %s367
                  %s370 = scalar_lea.vmem %s352, %s368 [#allocation3]
                $region70: #{tpu_custom_call.1} parent=57 // loop_footer
                  %s356 = sadd.s32 %s354, 1
                $region71: #{tpu_custom_call.1} parent=57 // loop_footer_branch
                  %353 = sbr.rel target = $region67
                $region72: #{tpu_custom_call.1} parent=57 // loop_exit
                  _
              $region58: #{tpu_custom_call.1} parent=35 // pred_fallthru
                _
              // Predicated region
              $region73: #{tpu_custom_call.1} parent=35 // pred_check
                _
              $region74: #{tpu_custom_call.1} parent=35 // pred_check_branch
                %372 = sbr.rel target = $region76
              $region75: #{tpu_custom_call.1} parent=35 // pred_region
                _
              $region76: #{tpu_custom_call.1} parent=35 // pred_fallthru
                _
            $region36: #{tpu_custom_call.1} parent=31 // pred_fallthru
              _
            // Predicated region
            $region37: #{tpu_custom_call.1} parent=31 // pred_check
              _
            $region38: #{tpu_custom_call.1} parent=31 // pred_check_branch
              %219 = sbr.rel target = $region40
            $region39: #{tpu_custom_call.1} parent=31 // pred_region
              %s221 = sshrl.u32 %s206, 4
              // While loop
              $region41: #{tpu_custom_call.1} parent=39 // loop_pre_header
                _
              $region42: #{tpu_custom_call.1} parent=39 // loop_header
                %s223 = sphi 0, %s225
                %p224 = scmp.ge.s32.totalorder %s223, %s221
                %s228 = sphi 0, %s265
                %s229 = sphi %s212, %s268
                %s230 = sphi %s202, %s269
              $region43: #{tpu_custom_call.1} parent=39 // loop_header_branch
                %227 = sbr.rel (%p224) target = $region47
              $region44: #{tpu_custom_call.1} parent=39 // loop_body
                %v231 = vld [vmem:[%s229] sm:$0xff]
                %232 = vst [vmem:[%s230] sm:$0xff] %v231
                %v233 = vld [vmem:[%s229 + $0x18] sm:$0xff]
                %234 = vst [vmem:[%s230 + $0x8] sm:$0xff] %v233
                %v235 = vld [vmem:[%s229 + $0x30] sm:$0xff]
                %236 = vst [vmem:[%s230 + $0x10] sm:$0xff] %v235
                %v237 = vld [vmem:[%s229 + $0x48] sm:$0xff]
                %238 = vst [vmem:[%s230 + $0x18] sm:$0xff] %v237
                %v239 = vld [vmem:[%s229 + $0x60] sm:$0xff]
                %240 = vst [vmem:[%s230 + $0x20] sm:$0xff] %v239
                %v241 = vld [vmem:[%s229 + $0x78] sm:$0xff]
                %242 = vst [vmem:[%s230 + $0x28] sm:$0xff] %v241
                %v243 = vld [vmem:[%s229 + $0x90] sm:$0xff]
                %244 = vst [vmem:[%s230 + $0x30] sm:$0xff] %v243
                %v245 = vld [vmem:[%s229 + $0xa8] sm:$0xff]
                %246 = vst [vmem:[%s230 + $0x38] sm:$0xff] %v245
                %v247 = vld [vmem:[%s229 + $0xc0] sm:$0xff]
                %248 = vst [vmem:[%s230 + $0x40] sm:$0xff] %v247
                %v249 = vld [vmem:[%s229 + $0xd8] sm:$0xff]
                %250 = vst [vmem:[%s230 + $0x48] sm:$0xff] %v249
                %v251 = vld [vmem:[%s229 + $0xf0] sm:$0xff]
                %252 = vst [vmem:[%s230 + $0x50] sm:$0xff] %v251
                %v253 = vld [vmem:[%s229 + $0x108] sm:$0xff]
                %254 = vst [vmem:[%s230 + $0x58] sm:$0xff] %v253
                %v255 = vld [vmem:[%s229 + $0x120] sm:$0xff]
                %256 = vst [vmem:[%s230 + $0x60] sm:$0xff] %v255
                %v257 = vld [vmem:[%s229 + $0x138] sm:$0xff]
                %258 = vst [vmem:[%s230 + $0x68] sm:$0xff] %v257
                %v259 = vld [vmem:[%s229 + $0x150] sm:$0xff]
                %260 = vst [vmem:[%s230 + $0x70] sm:$0xff] %v259
                %v261 = vld [vmem:[%s229 + $0x168] sm:$0xff]
                %262 = vst [vmem:[%s230 + $0x78] sm:$0xff] %v261
                %s263 = sadd.s32 1, %s228
                %p264 = scmp.ge.s32.totalorder %s263, %s221
                %s265 = scalar_select %p264, 0, %s263
                %s266 = smul.u32 %s265, 384
                %s267 = smul.u32 %s265, 128
                %s268 = scalar_lea.vmem %s212, %s266
                %s269 = scalar_lea.vmem %s202, %s267 [#allocation3]
              $region45: #{tpu_custom_call.1} parent=39 // loop_footer
                %s225 = sadd.s32 %s223, 1
              $region46: #{tpu_custom_call.1} parent=39 // loop_footer_branch
                %222 = sbr.rel target = $region42
              $region47: #{tpu_custom_call.1} parent=39 // loop_exit
                _
              %s270 = sshrl.u32 %s206, 4
              %s271 = sand.u32 %s206, 15
              %s272 = smul.u32 %s270, 16
              %s273 = smul.u32 24, %s272
              %s274 = scalar_lea.vmem %s212, %s273
              %s275 = smul.u32 8, %s272
              %s276 = scalar_lea.vmem %s202, %s275 [#allocation3]
              // While loop
              $region48: #{tpu_custom_call.1} parent=39 // loop_pre_header
                _
              $region49: #{tpu_custom_call.1} parent=39 // loop_header
                %s278 = sphi 0, %s280
                %p279 = scmp.ge.s32.totalorder %s278, %s271
                %s283 = sphi 0, %s290
                %s284 = sphi %s274, %s293
                %s285 = sphi %s276, %s294
              $region50: #{tpu_custom_call.1} parent=39 // loop_header_branch
                %282 = sbr.rel (%p279) target = $region54
              $region51: #{tpu_custom_call.1} parent=39 // loop_body
                %v286 = vld [vmem:[%s284] sm:$0xff]
                %287 = vst [vmem:[%s285] sm:$0xff] %v286
                %s288 = sadd.s32 1, %s283
                %p289 = scmp.ge.s32.totalorder %s288, %s271
                %s290 = scalar_select %p289, 0, %s288
                %s291 = smul.u32 %s290, 24
                %s292 = smul.u32 %s290, 8
                %s293 = scalar_lea.vmem %s274, %s291
                %s294 = scalar_lea.vmem %s276, %s292 [#allocation3]
              $region52: #{tpu_custom_call.1} parent=39 // loop_footer
                %s280 = sadd.s32 %s278, 1
              $region53: #{tpu_custom_call.1} parent=39 // loop_footer_branch
                %277 = sbr.rel target = $region49
              $region54: #{tpu_custom_call.1} parent=39 // loop_exit
                _
            $region40: #{tpu_custom_call.1} parent=31 // pred_fallthru
              _
          $region32: #{tpu_custom_call.1} parent=27 // pred_fallthru
            _
          %373 = vnop
        $region28: #{tpu_custom_call.1} parent=23 // pred_fallthru
          _
        // Predicated region
        $region77: #{tpu_custom_call.1} parent=23 // pred_check
          %p374 = pneg %p92
        $region78: #{tpu_custom_call.1} parent=23 // pred_check_branch
          %376 = sbr.rel (%p374) target = $region80
        $region79: #{tpu_custom_call.1} parent=23 // pred_region
          %s377 = smul.u32 16, %s18
          %s378 = ssub.s32 38, %s377
          %p379 = scmp.lt.s32.totalorder %s378, 16
          %s380 = scalar_select %p379, %s378, 16
          %s381 = smul.u32 128, %s380
          %p382 = scmp.lt.s32.totalorder %s377, 37
          %s383 = scalar_select %p382, %s377, 37
          %s384 = smul.addr %s383, 8
          %s385 = scalar_lea.vmem %s2, %s384
          %s386 = smul.u32 16, %s18
          %s387 = ssub.s32 38, %s386
          %p388 = scmp.lt.s32.totalorder %s387, 16
          %s389 = scalar_select %p388, %s387, 16
          %s390 = smul.u32 128, %s389
        $region80: #{tpu_custom_call.1} parent=23 // pred_fallthru
          _
        // Predicated region
        $region81: #{tpu_custom_call.1} parent=23 // pred_check
          %p391 = pneg %p139
        $region82: #{tpu_custom_call.1} parent=23 // pred_check_branch
          %393 = sbr.rel (%p391) target = $region84
        $region83: #{tpu_custom_call.1} parent=23 // pred_region
          %s394 = smul.u32 16, %s18
          %s395 = ssub.s32 38, %s394
          %p396 = scmp.lt.s32.totalorder %s395, 16
          %s397 = scalar_select %p396, %s395, 16
          %s398 = smul.u32 128, %s397
          %p399 = scmp.lt.s32.totalorder %s394, 37
          %s400 = scalar_select %p399, %s394, 37
          %s401 = smul.addr %s400, 8
          %s402 = scalar_lea.vmem %s4, %s401
          %s403 = smul.u32 16, %s18
          %s404 = ssub.s32 38, %s403
          %p405 = scmp.lt.s32.totalorder %s404, 16
          %s406 = scalar_select %p405, %s404, 16
          %s407 = smul.u32 128, %s406
        $region84: #{tpu_custom_call.1} parent=23 // pred_fallthru
          _
      $region24: #{tpu_custom_call.1} parent=5 // pred_fallthru
        _
      %p408 = scmp.le.s32.totalorder 1, %s11
      %p409 = scmp.lt.s32.totalorder %s11, 10
      %p410 = pnand %p408, %p409
      %p411 = pneg %p410
      // Predicated region
      $region85: #{tpu_custom_call.1} parent=5 // pred_check
        _
      $region86: #{tpu_custom_call.1} parent=5 // pred_check_branch
        %413 = sbr.rel (%p410) target = $region88
      $region87: #{tpu_custom_call.1} parent=5 // pred_region
        %s414 = ssub.s32 %s11, 1
        %s415 = sand.u32 %s38, 1
        %s416 = sand.u32 %s38, 1
        %s417 = smul.addr %s416, 128
        %s418 = scalar_lea.vmem [#allocation3], %s417
        // Predicated region
        $region89: #{tpu_custom_call.1} parent=87 // pred_check
          %p419 = pneg %p51
        $region90: #{tpu_custom_call.1} parent=87 // pred_check_branch
          %421 = sbr.rel (%p419) target = $region92
        $region91: #{tpu_custom_call.1} parent=87 // pred_region
          _
        $region92: #{tpu_custom_call.1} parent=87 // pred_fallthru
          _
        %s422 = sand.u32 %s38, 1
        %s423 = sand.u32 %s38, 1
        %s424 = smul.addr %s423, 128
        %s425 = scalar_lea.vmem [#allocation3], %s424
        %p426 = pneg %p51
        %p427 = pneg %p48
        %p428 = pneg %p72
        %p429 = pneg %p69
        %s430 = smul.u32 16, %s20
        %s431 = ssub.s32 38, %s430
        %p432 = scmp.lt.s32.totalorder %s431, 16
        %s433 = scalar_select %p432, %s431, 16
        %s434 = smul.u32 128, %s433
        %p435 = scmp.lt.s32.totalorder %s430, 37
        %s436 = scalar_select %p435, %s430, 37
        %s437 = smul.addr %s436, 8
        %s438 = scalar_lea.vmem %s2, %s437
        %p439 = pneg %p98
        %p440 = pneg %p95
        %p441 = pneg %p119
        %p442 = pneg %p116
        %s443 = smul.u32 16, %s20
        %s444 = ssub.s32 38, %s443
        %p445 = scmp.lt.s32.totalorder %s444, 16
        %s446 = scalar_select %p445, %s444, 16
        %s447 = smul.u32 128, %s446
        %p448 = scmp.lt.s32.totalorder %s443, 37
        %s449 = scalar_select %p448, %s443, 37
        %s450 = smul.addr %s449, 8
        %s451 = scalar_lea.vmem %s4, %s450
        %p452 = pneg %p145
        %p453 = pneg %p142
        %p454 = pneg %p171
        %p455 = pneg %p168
        %s456 = sand.u32 %s158, 1
        %s457 = sand.u32 %s158, 1
        %s458 = smul.addr %s457, 128
        %s459 = scalar_lea.vmem [#allocation4], %s458
        %s460 = smul.u32 16, %s20
        %s461 = ssub.s32 38, %s460
        %p462 = scmp.lt.s32.totalorder %s461, 16
        %s463 = scalar_select %p462, %s461, 16
        %s464 = smul.u32 128, %s463
        %s465 = smul.u32 16, %s20
        %s466 = ssub.s32 38, %s465
        %p467 = scmp.lt.s32.totalorder %s466, 16
        %s468 = scalar_select %p467, %s466, 16
        %s469 = smul.u32 128, %s468
        %p470 = scmp.lt.s32.totalorder %s465, 37
        %s471 = scalar_select %p470, %s465, 37
        %s472 = smul.addr %s471, 8
        %s473 = scalar_lea.vmem %s2, %s472
        %s474 = smul.u32 16, %s20
        %s475 = ssub.s32 38, %s474
        %p476 = scmp.lt.s32.totalorder %s475, 16
        %s477 = scalar_select %p476, %s475, 16
        %s478 = smul.u32 128, %s477
        %s479 = smul.u32 16, %s20
        %s480 = ssub.s32 38, %s479
        %p481 = scmp.lt.s32.totalorder %s480, 16
        %s482 = scalar_select %p481, %s480, 16
        %s483 = smul.u32 128, %s482
        %p484 = scmp.lt.s32.totalorder %s479, 37
        %s485 = scalar_select %p484, %s479, 37
        %s486 = smul.addr %s485, 8
        %s487 = scalar_lea.vmem %s4, %s486
        %s488 = smul.u32 16, %s20
        %s489 = ssub.s32 38, %s488
        %p490 = scmp.lt.s32.totalorder %s489, 16
        %s491 = scalar_select %p490, %s489, 16
        %s492 = smul.u32 128, %s491
        %s493 = smul.u32 16, %s20
        %s494 = ssub.s32 38, %s493
        %p495 = scmp.lt.s32.totalorder %s494, 16
        %s496 = scalar_select %p495, %s494, 16
        %s497 = smul.u32 128, %s496
        %p498 = scmp.eq.s32.totalorder %s21, 0
        // Predicated region
        $region93: #{tpu_custom_call.1} parent=87 // pred_check
          %p499 = pneg %p498
        $region94: #{tpu_custom_call.1} parent=87 // pred_check_branch
          %501 = sbr.rel (%p499) target = $region96
        $region95: #{tpu_custom_call.1} parent=87 // pred_region
          %vm502 = vcmask 523264
          %503 = vst.msk [vmem:[#allocation2] sm:$0xff] %vm502, 0.0
          %504 = vst.msk [vmem:[#allocation2 + $0x8] sm:$0xff] %vm502, 0.0
          %505 = vst.msk [vmem:[#allocation2 + $0x10] sm:$0xff] %vm502, 0.0
          %506 = vst.msk [vmem:[#allocation2 + $0x18] sm:$0xff] %vm502, 0.0
          %507 = vst.msk [vmem:[#allocation2 + $0x20] sm:$0xff] %vm502, 0.0
          %508 = vst.msk [vmem:[#allocation2 + $0x28] sm:$0xff] %vm502, 0.0
          %509 = vst.msk [vmem:[#allocation2 + $0x30] sm:$0xff] %vm502, 0.0
          %510 = vst.msk [vmem:[#allocation2 + $0x38] sm:$0xff] %vm502, 0.0
          %511 = vst.msk [vmem:[#allocation2 + $0x40] sm:$0xff] %vm502, 0.0
          %512 = vst.msk [vmem:[#allocation2 + $0x48] sm:$0xff] %vm502, 0.0
          %513 = vst.msk [vmem:[#allocation2 + $0x50] sm:$0xff] %vm502, 0.0
          %514 = vst.msk [vmem:[#allocation2 + $0x58] sm:$0xff] %vm502, 0.0
          %515 = vst.msk [vmem:[#allocation2 + $0x60] sm:$0xff] %vm502, 0.0
          %516 = vst.msk [vmem:[#allocation2 + $0x68] sm:$0xff] %vm502, 0.0
          %517 = vst.msk [vmem:[#allocation2 + $0x70] sm:$0xff] %vm502, 0.0
          %518 = vst.msk [vmem:[#allocation2 + $0x78] sm:$0xff] %vm502, 0.0
        $region96: #{tpu_custom_call.1} parent=87 // pred_fallthru
          _
        %s519 = smul.u32 %s21, 128
        %s520 = scalar_lea.vmem %s1, %s519
        %v521 = vld [vmem:[%s520] sm:$0xff]
        %v522 = vld [vmem:[%s520 + $0x8] sm:$0xff]
        %v523 = vld [vmem:[%s520 + $0x10] sm:$0xff]
        %v524 = vld [vmem:[%s520 + $0x18] sm:$0xff]
        %v525 = vld [vmem:[%s520 + $0x20] sm:$0xff]
        %v526 = vld [vmem:[%s520 + $0x28] sm:$0xff]
        %v527 = vld [vmem:[%s520 + $0x30] sm:$0xff]
        %v528 = vld [vmem:[%s520 + $0x38] sm:$0xff]
        %v529 = vld [vmem:[%s520 + $0x40] sm:$0xff]
        %v530 = vld [vmem:[%s520 + $0x48] sm:$0xff]
        %v531 = vld [vmem:[%s520 + $0x50] sm:$0xff]
        %v532 = vld [vmem:[%s520 + $0x58] sm:$0xff]
        %v533 = vld [vmem:[%s520 + $0x60] sm:$0xff]
        %v534 = vld [vmem:[%s520 + $0x68] sm:$0xff]
        %v535 = vld [vmem:[%s520 + $0x70] sm:$0xff]
        %v536 = vld [vmem:[%s520 + $0x78] sm:$0xff]
        %p537 = scmp.lt.s32.totalorder %s21, 2
        // Predicated region
        $region97: #{tpu_custom_call.1} parent=87 // pred_check
          %p538 = pneg %p537
        $region98: #{tpu_custom_call.1} parent=87 // pred_check_branch
          %540 = sbr.rel (%p538) target = $region100
        $region99: #{tpu_custom_call.1} parent=87 // pred_region
          %v541 = vld [vmem:[%s418] sm:$0xff]
          %v542 = vld [vmem:[%s418 + $0x8] sm:$0xff]
          %v543 = vld [vmem:[%s418 + $0x10] sm:$0xff]
          %v544 = vld [vmem:[%s418 + $0x18] sm:$0xff]
          %v545 = vld [vmem:[%s418 + $0x20] sm:$0xff]
          %v546 = vld [vmem:[%s418 + $0x28] sm:$0xff]
          %v547 = vld [vmem:[%s418 + $0x30] sm:$0xff]
          %v548 = vld [vmem:[%s418 + $0x38] sm:$0xff]
          %v549 = vld [vmem:[%s418 + $0x40] sm:$0xff]
          %v550 = vld [vmem:[%s418 + $0x48] sm:$0xff]
          %v551 = vld [vmem:[%s418 + $0x50] sm:$0xff]
          %v552 = vld [vmem:[%s418 + $0x58] sm:$0xff]
          %v553 = vld [vmem:[%s418 + $0x60] sm:$0xff]
          %v554 = vld [vmem:[%s418 + $0x68] sm:$0xff]
          %v555 = vld [vmem:[%s418 + $0x70] sm:$0xff]
          %v556 = vld [vmem:[%s418 + $0x78] sm:$0xff]
          %v557 = vld [vmem:[#allocation2] sm:$0xff]
          %v558 = vld [vmem:[#allocation2 + $0x8] sm:$0xff]
          %v559 = vld [vmem:[#allocation2 + $0x10] sm:$0xff]
          %v560 = vld [vmem:[#allocation2 + $0x18] sm:$0xff]
          %v561 = vld [vmem:[#allocation2 + $0x20] sm:$0xff]
          %v562 = vld [vmem:[#allocation2 + $0x28] sm:$0xff]
          %v563 = vld [vmem:[#allocation2 + $0x30] sm:$0xff]
          %v564 = vld [vmem:[#allocation2 + $0x38] sm:$0xff]
          %v565 = vld [vmem:[#allocation2 + $0x40] sm:$0xff]
          %v566 = vld [vmem:[#allocation2 + $0x48] sm:$0xff]
          %v567 = vld [vmem:[#allocation2 + $0x50] sm:$0xff]
          %v568 = vld [vmem:[#allocation2 + $0x58] sm:$0xff]
          %v569 = vld [vmem:[#allocation2 + $0x60] sm:$0xff]
          %v570 = vld [vmem:[#allocation2 + $0x68] sm:$0xff]
          %v571 = vld [vmem:[#allocation2 + $0x70] sm:$0xff]
          %v572 = vld [vmem:[#allocation2 + $0x78] sm:$0xff]
          %573 = vmatprep.subr.mxu0 0.0
          %574 = vmatpush1.msra.mxu0 %v521
          %575 = vmatprep.subr.mxu0 0.0
          %576 = vmatpush1.msra.mxu0 %v522
          %577 = vmatprep.subr.mxu0 0.0
          %578 = vmatpush1.msra.mxu0 %v523
          %579 = vmatprep.subr.mxu0 0.0
          %580 = vmatpush1.msra.mxu0 %v524
          %581 = vmatprep.subr.mxu0 0.0
          %582 = vmatpush1.msra.mxu0 %v525
          %583 = vmatprep.subr.mxu0 0.0
          %584 = vmatpush1.msra.mxu0 %v526
          %585 = vmatprep.subr.mxu0 0.0
          %586 = vmatpush1.msra.mxu0 %v527
          %587 = vmatprep.subr.mxu0 0.0
          %588 = vmatpush1.msra.mxu0 %v528
          %589 = vmatprep.subr.mxu0 0.0
          %590 = vmatpush1.msra.mxu0 %v529
          %591 = vmatprep.subr.mxu0 0.0
          %592 = vmatpush1.msra.mxu0 %v530
          %593 = vmatprep.subr.mxu0 0.0
          %594 = vmatpush1.msra.mxu0 %v531
          %595 = vmatprep.subr.mxu0 0.0
          %596 = vmatpush1.msra.mxu0 %v532
          %597 = vmatprep.subr.mxu0 0.0
          %598 = vmatpush1.msra.mxu0 %v533
          %599 = vmatprep.subr.mxu0 0.0
          %600 = vmatpush1.msra.mxu0 %v534
          %601 = vmatprep.subr.mxu0 0.0
          %602 = vmatpush1.msra.mxu0 %v535
          %603 = vmatprep.subr.mxu0 0.0
          %604 = vmatpush1.msra.mxu0 %v536
          %605 = vmatprep.subr.mxu0 0.0
          %606 = vmatpush1.msra.mxu0 0.0
          %607 = vmatprep.subr.mxu0 0.0
          %608 = vmatpush1.msra.mxu0 0.0
          %609 = vmatprep.subr.mxu0 0.0
          %610 = vmatpush1.msra.mxu0 0.0
          %611 = vmatprep.subr.mxu0 0.0
          %612 = vmatpush1.msra.mxu0 0.0
          %613 = vmatprep.subr.mxu0 0.0
          %614 = vmatpush1.msra.mxu0 0.0
          %615 = vmatprep.subr.mxu0 0.0
          %616 = vmatpush1.msra.mxu0 0.0
          %617 = vmatprep.subr.mxu0 0.0
          %618 = vmatpush1.msra.mxu0 0.0
          %619 = vmatprep.subr.mxu0 0.0
          %620 = vmatpush1.msra.mxu0 0.0
          %621 = vmatprep.subr.mxu0 0.0
          %622 = vmatpush1.msra.mxu0 0.0
          %623 = vmatprep.subr.mxu0 0.0
          %624 = vmatpush1.msra.mxu0 0.0
          %625 = vmatprep.subr.mxu0 0.0
          %626 = vmatpush1.msra.mxu0 0.0
          %627 = vmatprep.subr.mxu0 0.0
          %628 = vmatpush1.msra.mxu0 0.0
          %629 = vmatprep.subr.mxu0 0.0
          %630 = vmatpush1.msra.mxu0 0.0
          %631 = vmatprep.subr.mxu0 0.0
          %632 = vmatpush1.msra.mxu0 0.0
          %633 = vmatprep.subr.mxu0 0.0
          %634 = vmatpush1.msra.mxu0 0.0
          %635 = vmatprep.subr.mxu0 0.0
          %636 = vmatpush1.msra.mxu0 0.0
          %637 = vmatprep.mubr.f32.mxu0 0.0
          %638 = vmatmul.mubr.f32.gmra.mrb[0].mxu0 %v541
          %v639 = vpop.f32.mrb[0].mxu0
          %v640 = vadd.f32 0.0, %v639
          %v641 = vpop.f32.mrb[0].mxu0
          %642 = vmatprep.mubr.f32.mxu0 0.0
          %643 = vmatmul.mubr.f32.gmra.mrb[0].mxu0 %v542
          %v644 = vpop.f32.mrb[0].mxu0
          %v645 = vadd.f32 0.0, %v644
          %v646 = vpop.f32.mrb[0].mxu0
          %647 = vmatprep.mubr.f32.mxu0 0.0
          %648 = vmatmul.mubr.f32.gmra.mrb[0].mxu0 %v543
          %v649 = vpop.f32.mrb[0].mxu0
          %v650 = vadd.f32 0.0, %v649
          %v651 = vpop.f32.mrb[0].mxu0
          %652 = vmatprep.mubr.f32.mxu0 0.0
          %653 = vmatmul.mubr.f32.gmra.mrb[0].mxu0 %v544
          %v654 = vpop.f32.mrb[0].mxu0
          %v655 = vadd.f32 0.0, %v654
          %v656 = vpop.f32.mrb[0].mxu0
          %657 = vmatprep.mubr.f32.mxu0 0.0
          %658 = vmatmul.mubr.f32.gmra.mrb[0].mxu0 %v545
          %v659 = vpop.f32.mrb[0].mxu0
          %v660 = vadd.f32 0.0, %v659
          %v661 = vpop.f32.mrb[0].mxu0
          %662 = vmatprep.mubr.f32.mxu0 0.0
          %663 = vmatmul.mubr.f32.gmra.mrb[0].mxu0 %v546
          %v664 = vpop.f32.mrb[0].mxu0
          %v665 = vadd.f32 0.0, %v664
          %v666 = vpop.f32.mrb[0].mxu0
          %667 = vmatprep.mubr.f32.mxu0 0.0
          %668 = vmatmul.mubr.f32.gmra.mrb[0].mxu0 %v547
          %v669 = vpop.f32.mrb[0].mxu0
          %v670 = vadd.f32 0.0, %v669
          %v671 = vpop.f32.mrb[0].mxu0
          %672 = vmatprep.mubr.f32.mxu0 0.0
          %673 = vmatmul.mubr.f32.gmra.mrb[0].mxu0 %v548
          %v674 = vpop.f32.mrb[0].mxu0
          %v675 = vadd.f32 0.0, %v674
          %v676 = vpop.f32.mrb[0].mxu0
          %677 = vmatprep.mubr.f32.mxu0 0.0
          %678 = vmatmul.mubr.f32.gmra.mrb[0].mxu0 %v549
          %v679 = vpop.f32.mrb[0].mxu0
          %v680 = vadd.f32 0.0, %v679
          %v681 = vpop.f32.mrb[0].mxu0
          %682 = vmatprep.mubr.f32.mxu0 0.0
          %683 = vmatmul.mubr.f32.gmra.mrb[0].mxu0 %v550
          %v684 = vpop.f32.mrb[0].mxu0
          %v685 = vadd.f32 0.0, %v684
          %v686 = vpop.f32.mrb[0].mxu0
          %687 = vmatprep.mubr.f32.mxu0 0.0
          %688 = vmatmul.mubr.f32.gmra.mrb[0].mxu0 %v551
          %v689 = vpop.f32.mrb[0].mxu0
          %v690 = vadd.f32 0.0, %v689
          %v691 = vpop.f32.mrb[0].mxu0
          %692 = vmatprep.mubr.f32.mxu0 0.0
          %693 = vmatmul.mubr.f32.gmra.mrb[0].mxu0 %v552
          %v694 = vpop.f32.mrb[0].mxu0
          %v695 = vadd.f32 0.0, %v694
          %v696 = vpop.f32.mrb[0].mxu0
          %697 = vmatprep.mubr.f32.mxu0 0.0
          %698 = vmatmul.mubr.f32.gmra.mrb[0].mxu0 %v553
          %v699 = vpop.f32.mrb[0].mxu0
          %v700 = vadd.f32 0.0, %v699
          %v701 = vpop.f32.mrb[0].mxu0
          %702 = vmatprep.mubr.f32.mxu0 0.0
          %703 = vmatmul.mubr.f32.gmra.mrb[0].mxu0 %v554
          %v704 = vpop.f32.mrb[0].mxu0
          %v705 = vadd.f32 0.0, %v704
          %v706 = vpop.f32.mrb[0].mxu0
          %707 = vmatprep.mubr.f32.mxu0 0.0
          %708 = vmatmul.mubr.f32.gmra.mrb[0].mxu0 %v555
          %v709 = vpop.f32.mrb[0].mxu0
          %v710 = vadd.f32 0.0, %v709
          %v711 = vpop.f32.mrb[0].mxu0
          %712 = vmatprep.mubr.f32.mxu0 0.0
          %713 = vmatmul.mubr.f32.gmra.mrb[0].mxu0 %v556
          %v714 = vpop.f32.mrb[0].mxu0
          %v715 = vadd.f32 0.0, %v714
          %v716 = vpop.f32.mrb[0].mxu0
          %717 = vdwg.mxu0
          %v718 = vadd.f32 %v557, %v640
          %v719 = vadd.f32 %v558, %v645
          %v720 = vadd.f32 %v559, %v650
          %v721 = vadd.f32 %v560, %v655
          %v722 = vadd.f32 %v561, %v660
          %v723 = vadd.f32 %v562, %v665
          %v724 = vadd.f32 %v563, %v670
          %v725 = vadd.f32 %v564, %v675
          %v726 = vadd.f32 %v565, %v680
          %v727 = vadd.f32 %v566, %v685
          %v728 = vadd.f32 %v567, %v690
          %v729 = vadd.f32 %v568, %v695
          %v730 = vadd.f32 %v569, %v700
          %v731 = vadd.f32 %v570, %v705
          %v732 = vadd.f32 %v571, %v710
          %v733 = vadd.f32 %v572, %v715
          %vm734 = vcmask 523264
          %735 = vst.msk [vmem:[#allocation2] sm:$0xff] %vm734, %v718
          %736 = vst.msk [vmem:[#allocation2 + $0x8] sm:$0xff] %vm734, %v719
          %737 = vst.msk [vmem:[#allocation2 + $0x10] sm:$0xff] %vm734, %v720
          %738 = vst.msk [vmem:[#allocation2 + $0x18] sm:$0xff] %vm734, %v721
          %739 = vst.msk [vmem:[#allocation2 + $0x20] sm:$0xff] %vm734, %v722
          %740 = vst.msk [vmem:[#allocation2 + $0x28] sm:$0xff] %vm734, %v723
          %741 = vst.msk [vmem:[#allocation2 + $0x30] sm:$0xff] %vm734, %v724
          %742 = vst.msk [vmem:[#allocation2 + $0x38] sm:$0xff] %vm734, %v725
          %743 = vst.msk [vmem:[#allocation2 + $0x40] sm:$0xff] %vm734, %v726
          %744 = vst.msk [vmem:[#allocation2 + $0x48] sm:$0xff] %vm734, %v727
          %745 = vst.msk [vmem:[#allocation2 + $0x50] sm:$0xff] %vm734, %v728
          %746 = vst.msk [vmem:[#allocation2 + $0x58] sm:$0xff] %vm734, %v729
          %747 = vst.msk [vmem:[#allocation2 + $0x60] sm:$0xff] %vm734, %v730
          %748 = vst.msk [vmem:[#allocation2 + $0x68] sm:$0xff] %vm734, %v731
          %749 = vst.msk [vmem:[#allocation2 + $0x70] sm:$0xff] %vm734, %v732
          %750 = vst.msk [vmem:[#allocation2 + $0x78] sm:$0xff] %vm734, %v733
        $region100: #{tpu_custom_call.1} parent=87 // pred_fallthru
          _
        %p751 = scmp.eq.s32.totalorder %s21, 2
        // Predicated region
        $region101: #{tpu_custom_call.1} parent=87 // pred_check
          %p752 = pneg %p751
        $region102: #{tpu_custom_call.1} parent=87 // pred_check_branch
          %754 = sbr.rel (%p752) target = $region104
        $region103: #{tpu_custom_call.1} parent=87 // pred_region
          %v755 = vlaneseq
          %v756 = vand.u32 %v755, 127
          %vm757 = vcmp.lt.s32.totalorder %v756, 44
          %v758 = vld [vmem:[%s418] sm:$0xff]
          %v759 = vld [vmem:[%s418 + $0x8] sm:$0xff]
          %v760 = vld [vmem:[%s418 + $0x10] sm:$0xff]
          %v761 = vld [vmem:[%s418 + $0x18] sm:$0xff]
          %v762 = vld [vmem:[%s418 + $0x20] sm:$0xff]
          %v763 = vld [vmem:[%s418 + $0x28] sm:$0xff]
          %v764 = vld [vmem:[%s418 + $0x30] sm:$0xff]
          %v765 = vld [vmem:[%s418 + $0x38] sm:$0xff]
          %v766 = vld [vmem:[%s418 + $0x40] sm:$0xff]
          %v767 = vld [vmem:[%s418 + $0x48] sm:$0xff]
          %v768 = vld [vmem:[%s418 + $0x50] sm:$0xff]
          %v769 = vld [vmem:[%s418 + $0x58] sm:$0xff]
          %v770 = vld [vmem:[%s418 + $0x60] sm:$0xff]
          %v771 = vld [vmem:[%s418 + $0x68] sm:$0xff]
          %v772 = vld [vmem:[%s418 + $0x70] sm:$0xff]
          %v773 = vld [vmem:[%s418 + $0x78] sm:$0xff]
          %v774 = vsel %vm757, %v758, 0.0
          %v775 = vsel %vm757, %v759, 0.0
          %v776 = vsel %vm757, %v760, 0.0
          %v777 = vsel %vm757, %v761, 0.0
          %v778 = vsel %vm757, %v762, 0.0
          %v779 = vsel %vm757, %v763, 0.0
          %v780 = vsel %vm757, %v764, 0.0
          %v781 = vsel %vm757, %v765, 0.0
          %v782 = vsel %vm757, %v766, 0.0
          %v783 = vsel %vm757, %v767, 0.0
          %v784 = vsel %vm757, %v768, 0.0
          %v785 = vsel %vm757, %v769, 0.0
          %v786 = vsel %vm757, %v770, 0.0
          %v787 = vsel %vm757, %v771, 0.0
          %v788 = vsel %vm757, %v772, 0.0
          %v789 = vsel %vm757, %v773, 0.0
          %v790 = vld [vmem:[#allocation2] sm:$0xff]
          %v791 = vld [vmem:[#allocation2 + $0x8] sm:$0xff]
          %v792 = vld [vmem:[#allocation2 + $0x10] sm:$0xff]
          %v793 = vld [vmem:[#allocation2 + $0x18] sm:$0xff]
          %v794 = vld [vmem:[#allocation2 + $0x20] sm:$0xff]
          %v795 = vld [vmem:[#allocation2 + $0x28] sm:$0xff]
          %v796 = vld [vmem:[#allocation2 + $0x30] sm:$0xff]
          %v797 = vld [vmem:[#allocation2 + $0x38] sm:$0xff]
          %v798 = vld [vmem:[#allocation2 + $0x40] sm:$0xff]
          %v799 = vld [vmem:[#allocation2 + $0x48] sm:$0xff]
          %v800 = vld [vmem:[#allocation2 + $0x50] sm:$0xff]
          %v801 = vld [vmem:[#allocation2 + $0x58] sm:$0xff]
          %v802 = vld [vmem:[#allocation2 + $0x60] sm:$0xff]
          %v803 = vld [vmem:[#allocation2 + $0x68] sm:$0xff]
          %v804 = vld [vmem:[#allocation2 + $0x70] sm:$0xff]
          %v805 = vld [vmem:[#allocation2 + $0x78] sm:$0xff]
          %806 = vmatprep.subr.mxu0 0.0
          %807 = vmatpush1.msra.mxu0 %v521
          %808 = vmatprep.subr.mxu0 0.0
          %809 = vmatpush1.msra.mxu0 %v522
          %810 = vmatprep.subr.mxu0 0.0
          %811 = vmatpush1.msra.mxu0 %v523
          %812 = vmatprep.subr.mxu0 0.0
          %813 = vmatpush1.msra.mxu0 %v524
          %814 = vmatprep.subr.mxu0 0.0
          %815 = vmatpush1.msra.mxu0 %v525
          %816 = vmatprep.subr.mxu0 0.0
          %817 = vmatpush1.msra.mxu0 %v526
          %818 = vmatprep.subr.mxu0 0.0
          %819 = vmatpush1.msra.mxu0 %v527
          %820 = vmatprep.subr.mxu0 0.0
          %821 = vmatpush1.msra.mxu0 %v528
          %822 = vmatprep.subr.mxu0 0.0
          %823 = vmatpush1.msra.mxu0 %v529
          %824 = vmatprep.subr.mxu0 0.0
          %825 = vmatpush1.msra.mxu0 %v530
          %826 = vmatprep.subr.mxu0 0.0
          %827 = vmatpush1.msra.mxu0 %v531
          %828 = vmatprep.subr.mxu0 0.0
          %829 = vmatpush1.msra.mxu0 %v532
          %830 = vmatprep.subr.mxu0 0.0
          %831 = vmatpush1.msra.mxu0 %v533
          %832 = vmatprep.subr.mxu0 0.0
          %833 = vmatpush1.msra.mxu0 %v534
          %834 = vmatprep.subr.mxu0 0.0
          %835 = vmatpush1.msra.mxu0 %v535
          %836 = vmatprep.subr.mxu0 0.0
          %837 = vmatpush1.msra.mxu0 %v536
          %838 = vmatprep.subr.mxu0 0.0
          %839 = vmatpush1.msra.mxu0 0.0
          %840 = vmatprep.subr.mxu0 0.0
          %841 = vmatpush1.msra.mxu0 0.0
          %842 = vmatprep.subr.mxu0 0.0
          %843 = vmatpush1.msra.mxu0 0.0
          %844 = vmatprep.subr.mxu0 0.0
          %845 = vmatpush1.msra.mxu0 0.0
          %846 = vmatprep.subr.mxu0 0.0
          %847 = vmatpush1.msra.mxu0 0.0
          %848 = vmatprep.subr.mxu0 0.0
          %849 = vmatpush1.msra.mxu0 0.0
          %850 = vmatprep.subr.mxu0 0.0
          %851 = vmatpush1.msra.mxu0 0.0
          %852 = vmatprep.subr.mxu0 0.0
          %853 = vmatpush1.msra.mxu0 0.0
          %854 = vmatprep.subr.mxu0 0.0
          %855 = vmatpush1.msra.mxu0 0.0
          %856 = vmatprep.subr.mxu0 0.0
          %857 = vmatpush1.msra.mxu0 0.0
          %858 = vmatprep.subr.mxu0 0.0
          %859 = vmatpush1.msra.mxu0 0.0
          %860 = vmatprep.subr.mxu0 0.0
          %861 = vmatpush1.msra.mxu0 0.0
          %862 = vmatprep.subr.mxu0 0.0
          %863 = vmatpush1.msra.mxu0 0.0
          %864 = vmatprep.subr.mxu0 0.0
          %865 = vmatpush1.msra.mxu0 0.0
          %866 = vmatprep.subr.mxu0 0.0
          %867 = vmatpush1.msra.mxu0 0.0
          %868 = vmatprep.subr.mxu0 0.0
          %869 = vmatpush1.msra.mxu0 0.0
          %870 = vmatprep.mubr.f32.mxu0 0.0
          %871 = vmatmul.mubr.f32.gmra.mrb[0].mxu0 %v774
          %v872 = vpop.f32.mrb[0].mxu0
          %v873 = vadd.f32 0.0, %v872
          %v874 = vpop.f32.mrb[0].mxu0
          %875 = vmatprep.mubr.f32.mxu0 0.0
          %876 = vmatmul.mubr.f32.gmra.mrb[0].mxu0 %v775
          %v877 = vpop.f32.mrb[0].mxu0
          %v878 = vadd.f32 0.0, %v877
          %v879 = vpop.f32.mrb[0].mxu0
          %880 = vmatprep.mubr.f32.mxu0 0.0
          %881 = vmatmul.mubr.f32.gmra.mrb[0].mxu0 %v776
          %v882 = vpop.f32.mrb[0].mxu0
          %v883 = vadd.f32 0.0, %v882
          %v884 = vpop.f32.mrb[0].mxu0
          %885 = vmatprep.mubr.f32.mxu0 0.0
          %886 = vmatmul.mubr.f32.gmra.mrb[0].mxu0 %v777
          %v887 = vpop.f32.mrb[0].mxu0
          %v888 = vadd.f32 0.0, %v887
          %v889 = vpop.f32.mrb[0].mxu0
          %890 = vmatprep.mubr.f32.mxu0 0.0
          %891 = vmatmul.mubr.f32.gmra.mrb[0].mxu0 %v778
          %v892 = vpop.f32.mrb[0].mxu0
          %v893 = vadd.f32 0.0, %v892
          %v894 = vpop.f32.mrb[0].mxu0
          %895 = vmatprep.mubr.f32.mxu0 0.0
          %896 = vmatmul.mubr.f32.gmra.mrb[0].mxu0 %v779
          %v897 = vpop.f32.mrb[0].mxu0
          %v898 = vadd.f32 0.0, %v897
          %v899 = vpop.f32.mrb[0].mxu0
          %900 = vmatprep.mubr.f32.mxu0 0.0
          %901 = vmatmul.mubr.f32.gmra.mrb[0].mxu0 %v780
          %v902 = vpop.f32.mrb[0].mxu0
          %v903 = vadd.f32 0.0, %v902
          %v904 = vpop.f32.mrb[0].mxu0
          %905 = vmatprep.mubr.f32.mxu0 0.0
          %906 = vmatmul.mubr.f32.gmra.mrb[0].mxu0 %v781
          %v907 = vpop.f32.mrb[0].mxu0
          %v908 = vadd.f32 0.0, %v907
          %v909 = vpop.f32.mrb[0].mxu0
          %910 = vmatprep.mubr.f32.mxu0 0.0
          %911 = vmatmul.mubr.f32.gmra.mrb[0].mxu0 %v782
          %v912 = vpop.f32.mrb[0].mxu0
          %v913 = vadd.f32 0.0, %v912
          %v914 = vpop.f32.mrb[0].mxu0
          %915 = vmatprep.mubr.f32.mxu0 0.0
          %916 = vmatmul.mubr.f32.gmra.mrb[0].mxu0 %v783
          %v917 = vpop.f32.mrb[0].mxu0
          %v918 = vadd.f32 0.0, %v917
          %v919 = vpop.f32.mrb[0].mxu0
          %920 = vmatprep.mubr.f32.mxu0 0.0
          %921 = vmatmul.mubr.f32.gmra.mrb[0].mxu0 %v784
          %v922 = vpop.f32.mrb[0].mxu0
          %v923 = vadd.f32 0.0, %v922
          %v924 = vpop.f32.mrb[0].mxu0
          %925 = vmatprep.mubr.f32.mxu0 0.0
          %926 = vmatmul.mubr.f32.gmra.mrb[0].mxu0 %v785
          %v927 = vpop.f32.mrb[0].mxu0
          %v928 = vadd.f32 0.0, %v927
          %v929 = vpop.f32.mrb[0].mxu0
          %930 = vmatprep.mubr.f32.mxu0 0.0
          %931 = vmatmul.mubr.f32.gmra.mrb[0].mxu0 %v786
          %v932 = vpop.f32.mrb[0].mxu0
          %v933 = vadd.f32 0.0, %v932
          %v934 = vpop.f32.mrb[0].mxu0
          %935 = vmatprep.mubr.f32.mxu0 0.0
          %936 = vmatmul.mubr.f32.gmra.mrb[0].mxu0 %v787
          %v937 = vpop.f32.mrb[0].mxu0
          %v938 = vadd.f32 0.0, %v937
          %v939 = vpop.f32.mrb[0].mxu0
          %940 = vmatprep.mubr.f32.mxu0 0.0
          %941 = vmatmul.mubr.f32.gmra.mrb[0].mxu0 %v788
          %v942 = vpop.f32.mrb[0].mxu0
          %v943 = vadd.f32 0.0, %v942
          %v944 = vpop.f32.mrb[0].mxu0
          %945 = vmatprep.mubr.f32.mxu0 0.0
          %946 = vmatmul.mubr.f32.gmra.mrb[0].mxu0 %v789
          %v947 = vpop.f32.mrb[0].mxu0
          %v948 = vadd.f32 0.0, %v947
          %v949 = vpop.f32.mrb[0].mxu0
          %950 = vdwg.mxu0
          %v951 = vadd.f32 %v790, %v873
          %v952 = vadd.f32 %v791, %v878
          %v953 = vadd.f32 %v792, %v883
          %v954 = vadd.f32 %v793, %v888
          %v955 = vadd.f32 %v794, %v893
          %v956 = vadd.f32 %v795, %v898
          %v957 = vadd.f32 %v796, %v903
          %v958 = vadd.f32 %v797, %v908
          %v959 = vadd.f32 %v798, %v913
          %v960 = vadd.f32 %v799, %v918
          %v961 = vadd.f32 %v800, %v923
          %v962 = vadd.f32 %v801, %v928
          %v963 = vadd.f32 %v802, %v933
          %v964 = vadd.f32 %v803, %v938
          %v965 = vadd.f32 %v804, %v943
          %v966 = vadd.f32 %v805, %v948
          %vm967 = vcmask 523264
          %968 = vst.msk [vmem:[#allocation2] sm:$0xff] %vm967, %v951
          %969 = vst.msk [vmem:[#allocation2 + $0x8] sm:$0xff] %vm967, %v952
          %970 = vst.msk [vmem:[#allocation2 + $0x10] sm:$0xff] %vm967, %v953
          %971 = vst.msk [vmem:[#allocation2 + $0x18] sm:$0xff] %vm967, %v954
          %972 = vst.msk [vmem:[#allocation2 + $0x20] sm:$0xff] %vm967, %v955
          %973 = vst.msk [vmem:[#allocation2 + $0x28] sm:$0xff] %vm967, %v956
          %974 = vst.msk [vmem:[#allocation2 + $0x30] sm:$0xff] %vm967, %v957
          %975 = vst.msk [vmem:[#allocation2 + $0x38] sm:$0xff] %vm967, %v958
          %976 = vst.msk [vmem:[#allocation2 + $0x40] sm:$0xff] %vm967, %v959
          %977 = vst.msk [vmem:[#allocation2 + $0x48] sm:$0xff] %vm967, %v960
          %978 = vst.msk [vmem:[#allocation2 + $0x50] sm:$0xff] %vm967, %v961
          %979 = vst.msk [vmem:[#allocation2 + $0x58] sm:$0xff] %vm967, %v962
          %980 = vst.msk [vmem:[#allocation2 + $0x60] sm:$0xff] %vm967, %v963
          %981 = vst.msk [vmem:[#allocation2 + $0x68] sm:$0xff] %vm967, %v964
          %982 = vst.msk [vmem:[#allocation2 + $0x70] sm:$0xff] %vm967, %v965
          %983 = vst.msk [vmem:[#allocation2 + $0x78] sm:$0xff] %vm967, %v966
          %v984 = vld [vmem:[#allocation2] sm:$0xff]
          %v985 = vld [vmem:[#allocation2 + $0x8] sm:$0xff]
          %v986 = vld [vmem:[#allocation2 + $0x10] sm:$0xff]
          %v987 = vld [vmem:[#allocation2 + $0x18] sm:$0xff]
          %v988 = vld [vmem:[#allocation2 + $0x20] sm:$0xff]
          %v989 = vld [vmem:[#allocation2 + $0x28] sm:$0xff]
          %v990 = vld [vmem:[#allocation2 + $0x30] sm:$0xff]
          %v991 = vld [vmem:[#allocation2 + $0x38] sm:$0xff]
          %v992 = vld [vmem:[#allocation2 + $0x40] sm:$0xff]
          %v993 = vld [vmem:[#allocation2 + $0x48] sm:$0xff]
          %v994 = vld [vmem:[#allocation2 + $0x50] sm:$0xff]
          %v995 = vld [vmem:[#allocation2 + $0x58] sm:$0xff]
          %v996 = vld [vmem:[#allocation2 + $0x60] sm:$0xff]
          %v997 = vld [vmem:[#allocation2 + $0x68] sm:$0xff]
          %v998 = vld [vmem:[#allocation2 + $0x70] sm:$0xff]
          %v999 = vld [vmem:[#allocation2 + $0x78] sm:$0xff]
          %v1000 = vld [vmem:[%s473] sm:$0xff]
          %v1001 = vld [vmem:[%s473 + $0x8] sm:$0xff]
          %v1002 = vld [vmem:[%s473 + $0x10] sm:$0xff]
          %v1003 = vld [vmem:[%s473 + $0x18] sm:$0xff]
          %v1004 = vld [vmem:[%s473 + $0x20] sm:$0xff]
          %v1005 = vld [vmem:[%s473 + $0x28] sm:$0xff]
          %v1006 = vld [vmem:[%s473 + $0x30] sm:$0xff]
          %v1007 = vld [vmem:[%s473 + $0x38] sm:$0xff]
          %v1008 = vld [vmem:[%s473 + $0x40] sm:$0xff]
          %v1009 = vld [vmem:[%s473 + $0x48] sm:$0xff]
          %v1010 = vld [vmem:[%s473 + $0x50] sm:$0xff]
          %v1011 = vld [vmem:[%s473 + $0x58] sm:$0xff]
          %v1012 = vld [vmem:[%s473 + $0x60] sm:$0xff]
          %v1013 = vld [vmem:[%s473 + $0x68] sm:$0xff]
          %v1014 = vld [vmem:[%s473 + $0x70] sm:$0xff]
          %v1015 = vld [vmem:[%s473 + $0x78] sm:$0xff]
          %v1016 = vmul.f32 %v984, 0.9
          %v1017 = vmul.f32 %v985, 0.9
          %v1018 = vmul.f32 %v986, 0.9
          %v1019 = vmul.f32 %v987, 0.9
          %v1020 = vmul.f32 %v988, 0.9
          %v1021 = vmul.f32 %v989, 0.9
          %v1022 = vmul.f32 %v990, 0.9
          %v1023 = vmul.f32 %v991, 0.9
          %v1024 = vmul.f32 %v992, 0.9
          %v1025 = vmul.f32 %v993, 0.9
          %v1026 = vmul.f32 %v994, 0.9
          %v1027 = vmul.f32 %v995, 0.9
          %v1028 = vmul.f32 %v996, 0.9
          %v1029 = vmul.f32 %v997, 0.9
          %v1030 = vmul.f32 %v998, 0.9
          %v1031 = vmul.f32 %v999, 0.9
          %v1032 = vmul.f32 %v1000, 0.1
          %v1033 = vmul.f32 %v1001, 0.1
          %v1034 = vmul.f32 %v1002, 0.1
          %v1035 = vmul.f32 %v1003, 0.1
          %v1036 = vmul.f32 %v1004, 0.1
          %v1037 = vmul.f32 %v1005, 0.1
          %v1038 = vmul.f32 %v1006, 0.1
          %v1039 = vmul.f32 %v1007, 0.1
          %v1040 = vmul.f32 %v1008, 0.1
          %v1041 = vmul.f32 %v1009, 0.1
          %v1042 = vmul.f32 %v1010, 0.1
          %v1043 = vmul.f32 %v1011, 0.1
          %v1044 = vmul.f32 %v1012, 0.1
          %v1045 = vmul.f32 %v1013, 0.1
          %v1046 = vmul.f32 %v1014, 0.1
          %v1047 = vmul.f32 %v1015, 0.1
          %v1048 = vadd.f32 %v1016, %v1032
          %v1049 = vadd.f32 %v1017, %v1033
          %v1050 = vadd.f32 %v1018, %v1034
          %v1051 = vadd.f32 %v1019, %v1035
          %v1052 = vadd.f32 %v1020, %v1036
          %v1053 = vadd.f32 %v1021, %v1037
          %v1054 = vadd.f32 %v1022, %v1038
          %v1055 = vadd.f32 %v1023, %v1039
          %v1056 = vadd.f32 %v1024, %v1040
          %v1057 = vadd.f32 %v1025, %v1041
          %v1058 = vadd.f32 %v1026, %v1042
          %v1059 = vadd.f32 %v1027, %v1043
          %v1060 = vadd.f32 %v1028, %v1044
          %v1061 = vadd.f32 %v1029, %v1045
          %v1062 = vadd.f32 %v1030, %v1046
          %v1063 = vadd.f32 %v1031, %v1047
          %v1064 = vld [vmem:[%s3] sm:$0xff]
          %v1065 = vld [vmem:[%s3 + $0x8] sm:$0xff]
          %v1066 = vld [vmem:[%s3 + $0x10] sm:$0xff]
          %v1067 = vld [vmem:[%s3 + $0x18] sm:$0xff]
          %v1068 = vld [vmem:[%s3 + $0x20] sm:$0xff]
          %v1069 = vld [vmem:[%s3 + $0x28] sm:$0xff]
          %v1070 = vld [vmem:[%s3 + $0x30] sm:$0xff]
          %v1071 = vld [vmem:[%s3 + $0x38] sm:$0xff]
          %v1073 = vsel %vm967, %v1048, 0
          %v1076 = vsel %vm967, %v1049, 0
          %v1079 = vsel %vm967, %v1050, 0
          %v1082 = vsel %vm967, %v1051, 0
          %v1085 = vsel %vm967, %v1052, 0
          %v1088 = vsel %vm967, %v1053, 0
          %v1091 = vsel %vm967, %v1054, 0
          %v1094 = vsel %vm967, %v1055, 0
          %v1097 = vsel %vm967, %v1056, 0
          %v1100 = vsel %vm967, %v1057, 0
          %v1103 = vsel %vm967, %v1058, 0
          %v1106 = vsel %vm967, %v1059, 0
          %v1109 = vsel %vm967, %v1060, 0
          %v1112 = vsel %vm967, %v1061, 0
          %v1115 = vsel %vm967, %v1062, 0
          %v1118 = vsel %vm967, %v1063, 0
          %1120 = vmatprep.subr.mxu0 0.0
          %1121 = vmatpush1.msra.mxu0 %v1064
          %1122 = vmatprep.subr.mxu0 0.0
          %1123 = vmatpush1.msra.mxu0 %v1065
          %1124 = vmatprep.subr.mxu0 0.0
          %1125 = vmatpush1.msra.mxu0 %v1066
          %1126 = vmatprep.subr.mxu0 0.0
          %1127 = vmatpush1.msra.mxu0 %v1067
          %1128 = vmatprep.subr.mxu0 0.0
          %1129 = vmatpush1.msra.mxu0 %v1068
          %1130 = vmatprep.subr.mxu0 0.0
          %1131 = vmatpush1.msra.mxu0 %v1069
          %1132 = vmatprep.subr.mxu0 0.0
          %1133 = vmatpush1.msra.mxu0 %v1070
          %1134 = vmatprep.subr.mxu0 0.0
          %1135 = vmatpush1.msra.mxu0 %v1071
          %1136 = vmatprep.subr.mxu0 0.0
          %1137 = vmatpush1.msra.mxu0 0.0
          %1138 = vmatprep.subr.mxu0 0.0
          %1139 = vmatpush1.msra.mxu0 0.0
          %1140 = vmatprep.subr.mxu0 0.0
          %1141 = vmatpush1.msra.mxu0 0.0
          %1142 = vmatprep.subr.mxu0 0.0
          %1143 = vmatpush1.msra.mxu0 0.0
          %1144 = vmatprep.subr.mxu0 0.0
          %1145 = vmatpush1.msra.mxu0 0.0
          %1146 = vmatprep.subr.mxu0 0.0
          %1147 = vmatpush1.msra.mxu0 0.0
          %1148 = vmatprep.subr.mxu0 0.0
          %1149 = vmatpush1.msra.mxu0 0.0
          %1150 = vmatprep.subr.mxu0 0.0
          %1151 = vmatpush1.msra.mxu0 0.0
          %1152 = vmatprep.subr.mxu0 0.0
          %1153 = vmatpush1.msra.mxu0 0.0
          %1154 = vmatprep.subr.mxu0 0.0
          %1155 = vmatpush1.msra.mxu0 0.0
          %1156 = vmatprep.subr.mxu0 0.0
          %1157 = vmatpush1.msra.mxu0 0.0
          %1158 = vmatprep.subr.mxu0 0.0
          %1159 = vmatpush1.msra.mxu0 0.0
          %1160 = vmatprep.subr.mxu0 0.0
          %1161 = vmatpush1.msra.mxu0 0.0
          %1162 = vmatprep.subr.mxu0 0.0
          %1163 = vmatpush1.msra.mxu0 0.0
          %1164 = vmatprep.subr.mxu0 0.0
          %1165 = vmatpush1.msra.mxu0 0.0
          %1166 = vmatprep.subr.mxu0 0.0
          %1167 = vmatpush1.msra.mxu0 0.0
          %1168 = vmatprep.subr.mxu0 0.0
          %1169 = vmatpush1.msra.mxu0 0.0
          %1170 = vmatprep.subr.mxu0 0.0
          %1171 = vmatpush1.msra.mxu0 0.0
          %1172 = vmatprep.subr.mxu0 0.0
          %1173 = vmatpush1.msra.mxu0 0.0
          %1174 = vmatprep.subr.mxu0 0.0
          %1175 = vmatpush1.msra.mxu0 0.0
          %1176 = vmatprep.subr.mxu0 0.0
          %1177 = vmatpush1.msra.mxu0 0.0
          %1178 = vmatprep.subr.mxu0 0.0
          %1179 = vmatpush1.msra.mxu0 0.0
          %1180 = vmatprep.subr.mxu0 0.0
          %1181 = vmatpush1.msra.mxu0 0.0
          %1182 = vmatprep.subr.mxu0 0.0
          %1183 = vmatpush1.msra.mxu0 0.0
          %1184 = vmatprep.mubr.f32.mxu0 0.0
          %1185 = vmatmul.mubr.f32.gmra.mrb[0].mxu0 %v1073
          %v1186 = vpop.f32.mrb[0].mxu0
          %v1187 = vadd.f32 0.0, %v1186
          %v1188 = vpop.f32.mrb[0].mxu0
          %1189 = vmatprep.mubr.f32.mxu0 0.0
          %1190 = vmatmul.mubr.f32.gmra.mrb[0].mxu0 %v1076
          %v1191 = vpop.f32.mrb[0].mxu0
          %v1192 = vadd.f32 0.0, %v1191
          %v1193 = vpop.f32.mrb[0].mxu0
          %1194 = vmatprep.mubr.f32.mxu0 0.0
          %1195 = vmatmul.mubr.f32.gmra.mrb[0].mxu0 %v1079
          %v1196 = vpop.f32.mrb[0].mxu0
          %v1197 = vadd.f32 0.0, %v1196
          %v1198 = vpop.f32.mrb[0].mxu0
          %1199 = vmatprep.mubr.f32.mxu0 0.0
          %1200 = vmatmul.mubr.f32.gmra.mrb[0].mxu0 %v1082
          %v1201 = vpop.f32.mrb[0].mxu0
          %v1202 = vadd.f32 0.0, %v1201
          %v1203 = vpop.f32.mrb[0].mxu0
          %1204 = vmatprep.mubr.f32.mxu0 0.0
          %1205 = vmatmul.mubr.f32.gmra.mrb[0].mxu0 %v1085
          %v1206 = vpop.f32.mrb[0].mxu0
          %v1207 = vadd.f32 0.0, %v1206
          %v1208 = vpop.f32.mrb[0].mxu0
          %1209 = vmatprep.mubr.f32.mxu0 0.0
          %1210 = vmatmul.mubr.f32.gmra.mrb[0].mxu0 %v1088
          %v1211 = vpop.f32.mrb[0].mxu0
          %v1212 = vadd.f32 0.0, %v1211
          %v1213 = vpop.f32.mrb[0].mxu0
          %1214 = vmatprep.mubr.f32.mxu0 0.0
          %1215 = vmatmul.mubr.f32.gmra.mrb[0].mxu0 %v1091
          %v1216 = vpop.f32.mrb[0].mxu0
          %v1217 = vadd.f32 0.0, %v1216
          %v1218 = vpop.f32.mrb[0].mxu0
          %1219 = vmatprep.mubr.f32.mxu0 0.0
          %1220 = vmatmul.mubr.f32.gmra.mrb[0].mxu0 %v1094
          %v1221 = vpop.f32.mrb[0].mxu0
          %v1222 = vadd.f32 0.0, %v1221
          %v1223 = vpop.f32.mrb[0].mxu0
          %1224 = vmatprep.mubr.f32.mxu0 0.0
          %1225 = vmatmul.mubr.f32.gmra.mrb[0].mxu0 %v1097
          %v1226 = vpop.f32.mrb[0].mxu0
          %v1227 = vadd.f32 0.0, %v1226
          %v1228 = vpop.f32.mrb[0].mxu0
          %1229 = vmatprep.mubr.f32.mxu0 0.0
          %1230 = vmatmul.mubr.f32.gmra.mrb[0].mxu0 %v1100
          %v1231 = vpop.f32.mrb[0].mxu0
          %v1232 = vadd.f32 0.0, %v1231
          %v1233 = vpop.f32.mrb[0].mxu0
          %1234 = vmatprep.mubr.f32.mxu0 0.0
          %1235 = vmatmul.mubr.f32.gmra.mrb[0].mxu0 %v1103
          %v1236 = vpop.f32.mrb[0].mxu0
          %v1237 = vadd.f32 0.0, %v1236
          %v1238 = vpop.f32.mrb[0].mxu0
          %1239 = vmatprep.mubr.f32.mxu0 0.0
          %1240 = vmatmul.mubr.f32.gmra.mrb[0].mxu0 %v1106
          %v1241 = vpop.f32.mrb[0].mxu0
          %v1242 = vadd.f32 0.0, %v1241
          %v1243 = vpop.f32.mrb[0].mxu0
          %1244 = vmatprep.mubr.f32.mxu0 0.0
          %1245 = vmatmul.mubr.f32.gmra.mrb[0].mxu0 %v1109
          %v1246 = vpop.f32.mrb[0].mxu0
          %v1247 = vadd.f32 0.0, %v1246
          %v1248 = vpop.f32.mrb[0].mxu0
          %1249 = vmatprep.mubr.f32.mxu0 0.0
          %1250 = vmatmul.mubr.f32.gmra.mrb[0].mxu0 %v1112
          %v1251 = vpop.f32.mrb[0].mxu0
          %v1252 = vadd.f32 0.0, %v1251
          %v1253 = vpop.f32.mrb[0].mxu0
          %1254 = vmatprep.mubr.f32.mxu0 0.0
          %1255 = vmatmul.mubr.f32.gmra.mrb[0].mxu0 %v1115
          %v1256 = vpop.f32.mrb[0].mxu0
          %v1257 = vadd.f32 0.0, %v1256
          %v1258 = vpop.f32.mrb[0].mxu0
          %1259 = vmatprep.mubr.f32.mxu0 0.0
          %1260 = vmatmul.mubr.f32.gmra.mrb[0].mxu0 %v1118
          %v1261 = vpop.f32.mrb[0].mxu0
          %v1262 = vadd.f32 0.0, %v1261
          %v1263 = vpop.f32.mrb[0].mxu0
          %1264 = vdwg.mxu0
          %v1265 = vmul.f32 %v1187, 0.22314355
          %v1266 = vmul.f32 %v1192, 0.22314355
          %v1267 = vmul.f32 %v1197, 0.22314355
          %v1268 = vmul.f32 %v1202, 0.22314355
          %v1269 = vmul.f32 %v1207, 0.22314355
          %v1270 = vmul.f32 %v1212, 0.22314355
          %v1271 = vmul.f32 %v1217, 0.22314355
          %v1272 = vmul.f32 %v1222, 0.22314355
          %v1273 = vmul.f32 %v1227, 0.22314355
          %v1274 = vmul.f32 %v1232, 0.22314355
          %v1275 = vmul.f32 %v1237, 0.22314355
          %v1276 = vmul.f32 %v1242, 0.22314355
          %v1277 = vmul.f32 %v1247, 0.22314355
          %v1278 = vmul.f32 %v1252, 0.22314355
          %v1279 = vmul.f32 %v1257, 0.22314355
          %v1280 = vmul.f32 %v1262, 0.22314355
          %v1281 = vmul.f32 %v1048, 0.7768564
          %v1282 = vmul.f32 %v1049, 0.7768564
          %v1283 = vmul.f32 %v1050, 0.7768564
          %v1284 = vmul.f32 %v1051, 0.7768564
          %v1285 = vmul.f32 %v1052, 0.7768564
          %v1286 = vmul.f32 %v1053, 0.7768564
          %v1287 = vmul.f32 %v1054, 0.7768564
          %v1288 = vmul.f32 %v1055, 0.7768564
          %v1289 = vmul.f32 %v1056, 0.7768564
          %v1290 = vmul.f32 %v1057, 0.7768564
          %v1291 = vmul.f32 %v1058, 0.7768564
          %v1292 = vmul.f32 %v1059, 0.7768564
          %v1293 = vmul.f32 %v1060, 0.7768564
          %v1294 = vmul.f32 %v1061, 0.7768564
          %v1295 = vmul.f32 %v1062, 0.7768564
          %v1296 = vmul.f32 %v1063, 0.7768564
          %v1297 = vadd.f32 %v1265, %v1281
          %v1298 = vadd.f32 %v1266, %v1282
          %v1299 = vadd.f32 %v1267, %v1283
          %v1300 = vadd.f32 %v1268, %v1284
          %v1301 = vadd.f32 %v1269, %v1285
          %v1302 = vadd.f32 %v1270, %v1286
          %v1303 = vadd.f32 %v1271, %v1287
          %v1304 = vadd.f32 %v1272, %v1288
          %v1305 = vadd.f32 %v1273, %v1289
          %v1306 = vadd.f32 %v1274, %v1290
          %v1307 = vadd.f32 %v1275, %v1291
          %v1308 = vadd.f32 %v1276, %v1292
          %v1309 = vadd.f32 %v1277, %v1293
          %v1310 = vadd.f32 %v1278, %v1294
          %v1311 = vadd.f32 %v1279, %v1295
          %v1312 = vadd.f32 %v1280, %v1296
          %v1313 = vld [vmem:[%s487] sm:$0xff]
          %v1314 = vld [vmem:[%s487 + $0x8] sm:$0xff]
          %v1315 = vld [vmem:[%s487 + $0x10] sm:$0xff]
          %v1316 = vld [vmem:[%s487 + $0x18] sm:$0xff]
          %v1317 = vld [vmem:[%s487 + $0x20] sm:$0xff]
          %v1318 = vld [vmem:[%s487 + $0x28] sm:$0xff]
          %v1319 = vld [vmem:[%s487 + $0x30] sm:$0xff]
          %v1320 = vld [vmem:[%s487 + $0x38] sm:$0xff]
          %v1321 = vld [vmem:[%s487 + $0x40] sm:$0xff]
          %v1322 = vld [vmem:[%s487 + $0x48] sm:$0xff]
          %v1323 = vld [vmem:[%s487 + $0x50] sm:$0xff]
          %v1324 = vld [vmem:[%s487 + $0x58] sm:$0xff]
          %v1325 = vld [vmem:[%s487 + $0x60] sm:$0xff]
          %v1326 = vld [vmem:[%s487 + $0x68] sm:$0xff]
          %v1327 = vld [vmem:[%s487 + $0x70] sm:$0xff]
          %v1328 = vld [vmem:[%s487 + $0x78] sm:$0xff]
          %v1329 = vadd.f32 %v1297, %v1313
          %v1330 = vadd.f32 %v1298, %v1314
          %v1331 = vadd.f32 %v1299, %v1315
          %v1332 = vadd.f32 %v1300, %v1316
          %v1333 = vadd.f32 %v1301, %v1317
          %v1334 = vadd.f32 %v1302, %v1318
          %v1335 = vadd.f32 %v1303, %v1319
          %v1336 = vadd.f32 %v1304, %v1320
          %v1337 = vadd.f32 %v1305, %v1321
          %v1338 = vadd.f32 %v1306, %v1322
          %v1339 = vadd.f32 %v1307, %v1323
          %v1340 = vadd.f32 %v1308, %v1324
          %v1341 = vadd.f32 %v1309, %v1325
          %v1342 = vadd.f32 %v1310, %v1326
          %v1343 = vadd.f32 %v1311, %v1327
          %v1344 = vadd.f32 %v1312, %v1328
          %1345 = vst.msk [vmem:[%s459] sm:$0xff] %vm967, %v1329
          %1346 = vst.msk [vmem:[%s459 + $0x8] sm:$0xff] %vm967, %v1330
          %1347 = vst.msk [vmem:[%s459 + $0x10] sm:$0xff] %vm967, %v1331
          %1348 = vst.msk [vmem:[%s459 + $0x18] sm:$0xff] %vm967, %v1332
          %1349 = vst.msk [vmem:[%s459 + $0x20] sm:$0xff] %vm967, %v1333
          %1350 = vst.msk [vmem:[%s459 + $0x28] sm:$0xff] %vm967, %v1334
          %1351 = vst.msk [vmem:[%s459 + $0x30] sm:$0xff] %vm967, %v1335
          %1352 = vst.msk [vmem:[%s459 + $0x38] sm:$0xff] %vm967, %v1336
          %1353 = vst.msk [vmem:[%s459 + $0x40] sm:$0xff] %vm967, %v1337
          %1354 = vst.msk [vmem:[%s459 + $0x48] sm:$0xff] %vm967, %v1338
          %1355 = vst.msk [vmem:[%s459 + $0x50] sm:$0xff] %vm967, %v1339
          %1356 = vst.msk [vmem:[%s459 + $0x58] sm:$0xff] %vm967, %v1340
          %1357 = vst.msk [vmem:[%s459 + $0x60] sm:$0xff] %vm967, %v1341
          %1358 = vst.msk [vmem:[%s459 + $0x68] sm:$0xff] %vm967, %v1342
          %1359 = vst.msk [vmem:[%s459 + $0x70] sm:$0xff] %vm967, %v1343
          %1360 = vst.msk [vmem:[%s459 + $0x78] sm:$0xff] %vm967, %v1344
        $region104: #{tpu_custom_call.1} parent=87 // pred_fallthru
          _
        %s1361 = sand.u32 %s158, 1
        %s1362 = sand.u32 %s158, 1
        %s1363 = smul.addr %s1362, 128
        %s1364 = scalar_lea.vmem [#allocation4], %s1363
        // Predicated region
        $region105: #{tpu_custom_call.1} parent=87 // pred_check
          %p1365 = pneg %p168
        $region106: #{tpu_custom_call.1} parent=87 // pred_check_branch
          %1367 = sbr.rel (%p1365) target = $region108
        $region107: #{tpu_custom_call.1} parent=87 // pred_region
          %s1368 = smul.u32 16, %s20
          %s1369 = ssub.s32 38, %s1368
          %p1370 = scmp.lt.s32.totalorder %s1369, 16
          %s1371 = scalar_select %p1370, %s1369, 16
          %s1372 = smul.u32 128, %s1371
          %p1373 = scmp.ne.s32.totalorder 0, %s1372
          %s1374 = smul.addr %s1368, 8
          %s1375 = scalar_lea.vmem %s5, %s1374
          // Predicated region
          $region109: #{tpu_custom_call.1} parent=107 // pred_check
            %p1376 = pneg %p1373
          $region110: #{tpu_custom_call.1} parent=107 // pred_check_branch
            %1378 = sbr.rel (%p1376) target = $region112
          $region111: #{tpu_custom_call.1} parent=107 // pred_region
            // Predicated region
            $region113: #{tpu_custom_call.1} parent=111 // pred_check
              _
            $region114: #{tpu_custom_call.1} parent=111 // pred_check_branch
              %1380 = sbr.rel (0) target = $region116
            $region115: #{tpu_custom_call.1} parent=111 // pred_region
              // Predicated region
              $region135: #{tpu_custom_call.1} parent=115 // pred_check
                _
              $region136: #{tpu_custom_call.1} parent=115 // pred_check_branch
                %1459 = sbr.rel (0) target = $region138
              $region137: #{tpu_custom_call.1} parent=115 // pred_region
                %s1460 = sshrl.u32 %s1371, 4
                // While loop
                $region139: #{tpu_custom_call.1} parent=137 // loop_pre_header
                  _
                $region140: #{tpu_custom_call.1} parent=137 // loop_header
                  %s1462 = sphi 0, %s1464
                  %p1463 = scmp.ge.s32.totalorder %s1462, %s1460
                  %s1467 = sphi 0, %s1504
                  %s1468 = sphi %s1364, %s1507
                  %s1469 = sphi %s1375, %s1508
                $region141: #{tpu_custom_call.1} parent=137 // loop_header_branch
                  %1466 = sbr.rel (%p1463) target = $region145
                $region142: #{tpu_custom_call.1} parent=137 // loop_body
                  %v1470 = vld [vmem:[%s1468] sm:$0xff]
                  %1471 = vst [vmem:[%s1469] sm:$0xff] %v1470
                  %v1472 = vld [vmem:[%s1468 + $0x8] sm:$0xff]
                  %1473 = vst [vmem:[%s1469 + $0x8] sm:$0xff] %v1472
                  %v1474 = vld [vmem:[%s1468 + $0x10] sm:$0xff]
                  %1475 = vst [vmem:[%s1469 + $0x10] sm:$0xff] %v1474
                  %v1476 = vld [vmem:[%s1468 + $0x18] sm:$0xff]
                  %1477 = vst [vmem:[%s1469 + $0x18] sm:$0xff] %v1476
                  %v1478 = vld [vmem:[%s1468 + $0x20] sm:$0xff]
                  %1479 = vst [vmem:[%s1469 + $0x20] sm:$0xff] %v1478
                  %v1480 = vld [vmem:[%s1468 + $0x28] sm:$0xff]
                  %1481 = vst [vmem:[%s1469 + $0x28] sm:$0xff] %v1480
                  %v1482 = vld [vmem:[%s1468 + $0x30] sm:$0xff]
                  %1483 = vst [vmem:[%s1469 + $0x30] sm:$0xff] %v1482
                  %v1484 = vld [vmem:[%s1468 + $0x38] sm:$0xff]
                  %1485 = vst [vmem:[%s1469 + $0x38] sm:$0xff] %v1484
                  %v1486 = vld [vmem:[%s1468 + $0x40] sm:$0xff]
                  %1487 = vst [vmem:[%s1469 + $0x40] sm:$0xff] %v1486
                  %v1488 = vld [vmem:[%s1468 + $0x48] sm:$0xff]
                  %1489 = vst [vmem:[%s1469 + $0x48] sm:$0xff] %v1488
                  %v1490 = vld [vmem:[%s1468 + $0x50] sm:$0xff]
                  %1491 = vst [vmem:[%s1469 + $0x50] sm:$0xff] %v1490
                  %v1492 = vld [vmem:[%s1468 + $0x58] sm:$0xff]
                  %1493 = vst [vmem:[%s1469 + $0x58] sm:$0xff] %v1492
                  %v1494 = vld [vmem:[%s1468 + $0x60] sm:$0xff]
                  %1495 = vst [vmem:[%s1469 + $0x60] sm:$0xff] %v1494
                  %v1496 = vld [vmem:[%s1468 + $0x68] sm:$0xff]
                  %1497 = vst [vmem:[%s1469 + $0x68] sm:$0xff] %v1496
                  %v1498 = vld [vmem:[%s1468 + $0x70] sm:$0xff]
                  %1499 = vst [vmem:[%s1469 + $0x70] sm:$0xff] %v1498
                  %v1500 = vld [vmem:[%s1468 + $0x78] sm:$0xff]
                  %1501 = vst [vmem:[%s1469 + $0x78] sm:$0xff] %v1500
                  %s1502 = sadd.s32 1, %s1467
                  %p1503 = scmp.ge.s32.totalorder %s1502, %s1460
                  %s1504 = scalar_select %p1503, 0, %s1502
                  %s1505 = smul.u32 %s1504, 128
                  %s1506 = smul.u32 %s1504, 128
                  %s1507 = scalar_lea.vmem %s1364, %s1505 [#allocation4]
                  %s1508 = scalar_lea.vmem %s1375, %s1506
                $region143: #{tpu_custom_call.1} parent=137 // loop_footer
                  %s1464 = sadd.s32 %s1462, 1
                $region144: #{tpu_custom_call.1} parent=137 // loop_footer_branch
                  %1461 = sbr.rel target = $region140
                $region145: #{tpu_custom_call.1} parent=137 // loop_exit
                  _
                %s1509 = sshrl.u32 %s1371, 4
                %s1510 = sand.u32 %s1371, 15
                %s1511 = smul.u32 %s1509, 16
                %s1512 = smul.u32 8, %s1511
                %s1513 = scalar_lea.vmem %s1364, %s1512 [#allocation4]
                %s1514 = smul.u32 8, %s1511
                %s1515 = scalar_lea.vmem %s1375, %s1514
                // While loop
                $region146: #{tpu_custom_call.1} parent=137 // loop_pre_header
                  _
                $region147: #{tpu_custom_call.1} parent=137 // loop_header
                  %s1517 = sphi 0, %s1519
                  %p1518 = scmp.ge.s32.totalorder %s1517, %s1510
                  %s1522 = sphi 0, %s1529
                  %s1523 = sphi %s1513, %s1532
                  %s1524 = sphi %s1515, %s1533
                $region148: #{tpu_custom_call.1} parent=137 // loop_header_branch
                  %1521 = sbr.rel (%p1518) target = $region152
                $region149: #{tpu_custom_call.1} parent=137 // loop_body
                  %v1525 = vld [vmem:[%s1523] sm:$0xff]
                  %1526 = vst [vmem:[%s1524] sm:$0xff] %v1525
                  %s1527 = sadd.s32 1, %s1522
                  %p1528 = scmp.ge.s32.totalorder %s1527, %s1510
                  %s1529 = scalar_select %p1528, 0, %s1527
                  %s1530 = smul.u32 %s1529, 8
                  %s1531 = smul.u32 %s1529, 8
                  %s1532 = scalar_lea.vmem %s1513, %s1530 [#allocation4]
                  %s1533 = scalar_lea.vmem %s1515, %s1531
                $region150: #{tpu_custom_call.1} parent=137 // loop_footer
                  %s1519 = sadd.s32 %s1517, 1
                $region151: #{tpu_custom_call.1} parent=137 // loop_footer_branch
                  %1516 = sbr.rel target = $region147
                $region152: #{tpu_custom_call.1} parent=137 // loop_exit
                  _
              $region138: #{tpu_custom_call.1} parent=115 // pred_fallthru
                _
              // Predicated region
              $region153: #{tpu_custom_call.1} parent=115 // pred_check
                _
              $region154: #{tpu_custom_call.1} parent=115 // pred_check_branch
                %1535 = sbr.rel target = $region156
              $region155: #{tpu_custom_call.1} parent=115 // pred_region
                _
              $region156: #{tpu_custom_call.1} parent=115 // pred_fallthru
                _
            $region116: #{tpu_custom_call.1} parent=111 // pred_fallthru
              _
            // Predicated region
            $region117: #{tpu_custom_call.1} parent=111 // pred_check
              _
            $region118: #{tpu_custom_call.1} parent=111 // pred_check_branch
              %1382 = sbr.rel target = $region120
            $region119: #{tpu_custom_call.1} parent=111 // pred_region
              %s1384 = sshrl.u32 %s1371, 4
              // While loop
              $region121: #{tpu_custom_call.1} parent=119 // loop_pre_header
                _
              $region122: #{tpu_custom_call.1} parent=119 // loop_header
                %s1386 = sphi 0, %s1388
                %p1387 = scmp.ge.s32.totalorder %s1386, %s1384
                %s1391 = sphi 0, %s1428
                %s1392 = sphi %s1364, %s1431
                %s1393 = sphi %s1375, %s1432
              $region123: #{tpu_custom_call.1} parent=119 // loop_header_branch
                %1390 = sbr.rel (%p1387) target = $region127
              $region124: #{tpu_custom_call.1} parent=119 // loop_body
                %v1394 = vld [vmem:[%s1392] sm:$0xff]
                %1395 = vst [vmem:[%s1393] sm:$0xff] %v1394
                %v1396 = vld [vmem:[%s1392 + $0x8] sm:$0xff]
                %1397 = vst [vmem:[%s1393 + $0x8] sm:$0xff] %v1396
                %v1398 = vld [vmem:[%s1392 + $0x10] sm:$0xff]
                %1399 = vst [vmem:[%s1393 + $0x10] sm:$0xff] %v1398
                %v1400 = vld [vmem:[%s1392 + $0x18] sm:$0xff]
                %1401 = vst [vmem:[%s1393 + $0x18] sm:$0xff] %v1400
                %v1402 = vld [vmem:[%s1392 + $0x20] sm:$0xff]
                %1403 = vst [vmem:[%s1393 + $0x20] sm:$0xff] %v1402
                %v1404 = vld [vmem:[%s1392 + $0x28] sm:$0xff]
                %1405 = vst [vmem:[%s1393 + $0x28] sm:$0xff] %v1404
                %v1406 = vld [vmem:[%s1392 + $0x30] sm:$0xff]
                %1407 = vst [vmem:[%s1393 + $0x30] sm:$0xff] %v1406
                %v1408 = vld [vmem:[%s1392 + $0x38] sm:$0xff]
                %1409 = vst [vmem:[%s1393 + $0x38] sm:$0xff] %v1408
                %v1410 = vld [vmem:[%s1392 + $0x40] sm:$0xff]
                %1411 = vst [vmem:[%s1393 + $0x40] sm:$0xff] %v1410
                %v1412 = vld [vmem:[%s1392 + $0x48] sm:$0xff]
                %1413 = vst [vmem:[%s1393 + $0x48] sm:$0xff] %v1412
                %v1414 = vld [vmem:[%s1392 + $0x50] sm:$0xff]
                %1415 = vst [vmem:[%s1393 + $0x50] sm:$0xff] %v1414
                %v1416 = vld [vmem:[%s1392 + $0x58] sm:$0xff]
                %1417 = vst [vmem:[%s1393 + $0x58] sm:$0xff] %v1416
                %v1418 = vld [vmem:[%s1392 + $0x60] sm:$0xff]
                %1419 = vst [vmem:[%s1393 + $0x60] sm:$0xff] %v1418
                %v1420 = vld [vmem:[%s1392 + $0x68] sm:$0xff]
                %1421 = vst [vmem:[%s1393 + $0x68] sm:$0xff] %v1420
                %v1422 = vld [vmem:[%s1392 + $0x70] sm:$0xff]
                %1423 = vst [vmem:[%s1393 + $0x70] sm:$0xff] %v1422
                %v1424 = vld [vmem:[%s1392 + $0x78] sm:$0xff]
                %1425 = vst [vmem:[%s1393 + $0x78] sm:$0xff] %v1424
                %s1426 = sadd.s32 1, %s1391
                %p1427 = scmp.ge.s32.totalorder %s1426, %s1384
                %s1428 = scalar_select %p1427, 0, %s1426
                %s1429 = smul.u32 %s1428, 128
                %s1430 = smul.u32 %s1428, 128
                %s1431 = scalar_lea.vmem %s1364, %s1429 [#allocation4]
                %s1432 = scalar_lea.vmem %s1375, %s1430
              $region125: #{tpu_custom_call.1} parent=119 // loop_footer
                %s1388 = sadd.s32 %s1386, 1
              $region126: #{tpu_custom_call.1} parent=119 // loop_footer_branch
                %1385 = sbr.rel target = $region122
              $region127: #{tpu_custom_call.1} parent=119 // loop_exit
                _
              %s1433 = sshrl.u32 %s1371, 4
              %s1434 = sand.u32 %s1371, 15
              %s1435 = smul.u32 %s1433, 16
              %s1436 = smul.u32 8, %s1435
              %s1437 = scalar_lea.vmem %s1364, %s1436 [#allocation4]
              %s1438 = smul.u32 8, %s1435
              %s1439 = scalar_lea.vmem %s1375, %s1438
              // While loop
              $region128: #{tpu_custom_call.1} parent=119 // loop_pre_header
                _
              $region129: #{tpu_custom_call.1} parent=119 // loop_header
                %s1441 = sphi 0, %s1443
                %p1442 = scmp.ge.s32.totalorder %s1441, %s1434
                %s1446 = sphi 0, %s1453
                %s1447 = sphi %s1437, %s1456
                %s1448 = sphi %s1439, %s1457
              $region130: #{tpu_custom_call.1} parent=119 // loop_header_branch
                %1445 = sbr.rel (%p1442) target = $region134
              $region131: #{tpu_custom_call.1} parent=119 // loop_body
                %v1449 = vld [vmem:[%s1447] sm:$0xff]
                %1450 = vst [vmem:[%s1448] sm:$0xff] %v1449
                %s1451 = sadd.s32 1, %s1446
                %p1452 = scmp.ge.s32.totalorder %s1451, %s1434
                %s1453 = scalar_select %p1452, 0, %s1451
                %s1454 = smul.u32 %s1453, 8
                %s1455 = smul.u32 %s1453, 8
                %s1456 = scalar_lea.vmem %s1437, %s1454 [#allocation4]
                %s1457 = scalar_lea.vmem %s1439, %s1455
              $region132: #{tpu_custom_call.1} parent=119 // loop_footer
                %s1443 = sadd.s32 %s1441, 1
              $region133: #{tpu_custom_call.1} parent=119 // loop_footer_branch
                %1440 = sbr.rel target = $region129
              $region134: #{tpu_custom_call.1} parent=119 // loop_exit
                _
            $region120: #{tpu_custom_call.1} parent=111 // pred_fallthru
              _
          $region112: #{tpu_custom_call.1} parent=107 // pred_fallthru
            _
          %1536 = vnop
        $region108: #{tpu_custom_call.1} parent=87 // pred_fallthru
          _
      $region88: #{tpu_custom_call.1} parent=5 // pred_fallthru
        _
      %p1537 = scmp.le.s32.totalorder 2, %s11
      // Predicated region
      $region157: #{tpu_custom_call.1} parent=5 // pred_check
        %p1538 = pneg %p1537
      $region158: #{tpu_custom_call.1} parent=5 // pred_check_branch
        %1540 = sbr.rel (%p1538) target = $region160
      $region159: #{tpu_custom_call.1} parent=5 // pred_region
        %s1541 = ssub.s32 %s11, 2
        // Predicated region
        $region161: #{tpu_custom_call.1} parent=159 // pred_check
          %p1542 = pneg %p174
        $region162: #{tpu_custom_call.1} parent=159 // pred_check_branch
          %1544 = sbr.rel (%p1542) target = $region164
        $region163: #{tpu_custom_call.1} parent=159 // pred_region
          %s1545 = sand.u32 %s159, 1
          %s1546 = sand.u32 %s159, 1
          %s1547 = smul.addr %s1546, 128
          %s1548 = scalar_lea.vmem [#allocation4], %s1547
        $region164: #{tpu_custom_call.1} parent=159 // pred_fallthru
          _
      $region160: #{tpu_custom_call.1} parent=5 // pred_fallthru
        _
    $region6: #{tpu_custom_call.1} parent=1 // loop_footer
      %s15 = sadd.s32 1, %s11
    $region7: #{tpu_custom_call.1} parent=1 // loop_footer_branch
      %10 = sbr.rel target = $region3
    $region8: #{tpu_custom_call.1} parent=1 // loop_exit
      _

</llo_original>
